<compile_context>
chip_gen: v5e
topology: v5e:2x2
jax: 0.10.0
libtpu: 0.0.40
codegen_flags: <defaults>
</compile_context>

<pallas_src>
import jax
import jax.numpy as jnp
import numpy as np
from jax import lax
from jax.experimental import pallas as pl
from jax.experimental.pallas import tpu as pltpu

LANE = 128  # padded hidden / head width (one vreg lane span)


def lstm_head_kernel(x_ref, w_ih_ref, w_hh_ref, b_ref,
                     w1_ref, b1_ref, w2_ref, b2_ref, w3_ref, b3_ref,
                     out_ref):
    """Entire LSTM recurrence + MLP head in one kernel invocation."""
    S, B, _ = x_ref.shape
    Hp = w_hh_ref.shape[0]              # padded hidden size (128)

    w_ih = w_ih_ref[...]                # (F, 4*Hp)
    w_hh = w_hh_ref[...]                # (Hp, 4*Hp)
    b = b_ref[...]                      # (1, 4*Hp)

    def step(t, carry):
        h, c = carry
        x_t = x_ref[t]                                                   # (B, F)
        gates = (jnp.dot(x_t, w_ih, preferred_element_type=jnp.float32)
                 + jnp.dot(h, w_hh, preferred_element_type=jnp.float32)
                 + b)                                                    # (B, 4*Hp)
        i = jax.nn.sigmoid(gates[:, 0 * Hp:1 * Hp])
        f = jax.nn.sigmoid(gates[:, 1 * Hp:2 * Hp])
        g = jnp.tanh(gates[:, 2 * Hp:3 * Hp])
        o = jax.nn.sigmoid(gates[:, 3 * Hp:4 * Hp])
        c_new = f * c + i * g
        h_new = o * jnp.tanh(c_new)
        return h_new, c_new

    h0 = jnp.zeros((B, Hp), jnp.float32)
    c0 = jnp.zeros((B, Hp), jnp.float32)
    h, _ = lax.fori_loop(0, S, step, (h0, c0), unroll=True)

    # head: relu(hn[0]) -> fc_1 -> relu -> fc -> linear (all 128-lane padded)
    out = jnp.maximum(h, 0.0)
    out = jnp.maximum(
        jnp.dot(out, w1_ref[...], preferred_element_type=jnp.float32) + b1_ref[...],
        0.0)
    out = jnp.dot(out, w2_ref[...], preferred_element_type=jnp.float32) + b2_ref[...]
    out = jnp.dot(out, w3_ref[...], preferred_element_type=jnp.float32) + b3_ref[...]
    out_ref[...] = out                   # (B, LANE); only column 0 is the real output


# ---------------------------------------------------------------------------
# wrapper-side zero padding (pure layout plumbing; no semantic change)
# ---------------------------------------------------------------------------
def _pad_axis(a, axis, new_size):
    pads = [(0, 0)] * a.ndim
    pads[axis] = (0, new_size - a.shape[axis])
    return jnp.pad(a, pads)


def _pad_gate_cols(w, H, Hp):
    """(..., 4H) -> (..., 4Hp), padding each gate block [i, f, g, o] separately."""
    parts = [_pad_axis(w[..., k * H:(k + 1) * H], -1, Hp) for k in range(4)]
    return jnp.concatenate(parts, axis=-1)


def _pad_params(p):
    H = p["w_hh"].shape[0]
    Hp = LANE
    w_ih = _pad_gate_cols(p["w_ih"], H, Hp)                          # (F, 4Hp)
    w_hh = _pad_axis(_pad_gate_cols(p["w_hh"], H, Hp), 0, Hp)        # (Hp, 4Hp)
    b = _pad_gate_cols(p["b"], H, Hp)                                # (1, 4Hp)
    w1 = _pad_axis(_pad_axis(p["w1"], 0, Hp), 1, LANE)               # (Hp, LANE)
    b1 = _pad_axis(p["b1"], 1, LANE)                                 # (1, LANE)
    w2 = _pad_axis(_pad_axis(p["w2"], 0, LANE), 1, LANE)             # (LANE, LANE)
    b2 = _pad_axis(p["b2"], 1, LANE)
    w3 = _pad_axis(_pad_axis(p["w3"], 0, LANE), 1, LANE)             # (LANE, LANE)
    b3 = _pad_axis(p["b3"], 1, LANE)
    return w_ih, w_hh, b, w1, b1, w2, b2, w3, b3


def shallow_regression_lstm(x, params):
    """x: (batch, seq, num_features) float32 -> (batch,) float32."""
    B, S, F = x.shape
    x_sbf = jnp.transpose(x, (1, 0, 2))          # (S, B, F): time leading
    w_ih, w_hh, b, w1, b1, w2, b2, w3, b3 = _pad_params(params)
    Hp = LANE

    out = pl.pallas_call(
        lstm_head_kernel,
        out_shape=jax.ShapeDtypeStruct((B, LANE), jnp.float32),
        grid=(1,),
        in_specs=[
            pl.BlockSpec((S, B, F), lambda i: (0, 0, 0)),            # x slab (VMEM)
            pl.BlockSpec((F, 4 * Hp), lambda i: (0, 0)),             # W_ih^T (padded)
            pl.BlockSpec((Hp, 4 * Hp), lambda i: (0, 0)),            # W_hh^T (padded)
            pl.BlockSpec((1, 4 * Hp), lambda i: (0, 0)),             # b_ih + b_hh
            pl.BlockSpec((Hp, LANE), lambda i: (0, 0)),              # fc_1.weight^T
            pl.BlockSpec((1, LANE), lambda i: (0, 0)),               # fc_1.bias
            pl.BlockSpec((LANE, LANE), lambda i: (0, 0)),            # fc.weight^T
            pl.BlockSpec((1, LANE), lambda i: (0, 0)),               # fc.bias
            pl.BlockSpec((LANE, LANE), lambda i: (0, 0)),            # linear.weight^T
            pl.BlockSpec((1, LANE), lambda i: (0, 0)),               # linear.bias
        ],
        out_specs=pl.BlockSpec((B, LANE), lambda i: (0, 0)),
        compiler_params=pltpu.CompilerParams(
            dimension_semantics=("arbitrary",)),
    )(x_sbf, w_ih, w_hh, b, w1, b1, w2, b2, w3, b3)

    return out[:, 0]                             # .flatten() -> (batch,)


# ---------------------------------------------------------------------------
# params / reference (unpadded, PyTorch-shaped)
# ---------------------------------------------------------------------------
def init_params(key, num_features, hidden_units):
    """Deterministic PyTorch-style uniform init (shapes from the module __init__)."""
    H = hidden_units
    ks = jax.random.split(key, 10)

    def u(k, shape, fan_in):
        bound = 1.0 / np.sqrt(fan_in)
        return jax.random.uniform(k, shape, jnp.float32, -bound, bound)

    w_ih = u(ks[0], (num_features, 4 * H), H)                # lstm.weight_ih_l0^T
    w_hh = u(ks[1], (H, 4 * H), H)                           # lstm.weight_hh_l0^T
    b = u(ks[2], (1, 4 * H), H) + u(ks[3], (1, 4 * H), H)    # b_ih + b_hh
    w1 = u(ks[4], (H, 32), H)                                # fc_1 (H -> 32)
    b1 = u(ks[5], (1, 32), H)
    w2 = u(ks[6], (32, 16), 32)                              # fc (32 -> 16)
    b2 = u(ks[7], (1, 16), 32)
    w3 = u(ks[8], (16, 1), 16)                               # linear (16 -> 1)
    b3 = u(ks[9], (1, 1), 16)
    return dict(w_ih=w_ih, w_hh=w_hh, b=b, w1=w1, b1=b1, w2=w2, b2=b2, w3=w3, b3=b3)


def reference_forward(x, p):
    """Pure-JAX reference matching nn.LSTM(batch_first) + MLP head semantics."""
    B, S, F = x.shape
    H = p["w_hh"].shape[0]
    h = jnp.zeros((B, H), jnp.float32)
    c = jnp.zeros((B, H), jnp.float32)
    for t in range(S):
        gates = x[:, t, :] @ p["w_ih"] + h @ p["w_hh"] + p["b"]
        i = jax.nn.sigmoid(gates[:, :H])
        f = jax.nn.sigmoid(gates[:, H:2 * H])
        g = jnp.tanh(gates[:, 2 * H:3 * H])
        o = jax.nn.sigmoid(gates[:, 3 * H:])
        c = f * c + i * g
        h = o * jnp.tanh(c)
    out = jnp.maximum(h, 0.0)
    out = jnp.maximum(out @ p["w1"] + p["b1"], 0.0)
    out = out @ p["w2"] + p["b2"]
    out = out @ p["w3"] + p["b3"]
    return out.reshape(-1)


if __name__ == "__main__":
    batch, seq, num_features, hidden_units = 2, 8, 4, 32

    key = jax.random.PRNGKey(0)
    k_x, k_p = jax.random.split(key)
    x = jax.random.normal(k_x, (batch, seq, num_features), jnp.float32)
    params = init_params(k_p, num_features, hidden_units)

    out = jax.block_until_ready(shallow_regression_lstm(x, params))
    ref = jax.block_until_ready(reference_forward(x, params))

    assert out.shape == (batch,), out.shape
    assert np.allclose(np.asarray(out), np.asarray(ref), atol=1e-4, rtol=1e-4), (out, ref)
    print("KERNEL_OK")
</pallas_src>

<mosaic_0001>
module attributes {stable_mosaic.version = 11 : i64} {
  func.func @lstm_head_kernel(%arg0: i32, %arg1: memref<8x2x4xf32, #tpu.memory_space<vmem>>, %arg2: memref<4x512xf32, #tpu.memory_space<vmem>>, %arg3: memref<128x512xf32, #tpu.memory_space<vmem>>, %arg4: memref<1x512xf32, #tpu.memory_space<vmem>>, %arg5: memref<128x128xf32, #tpu.memory_space<vmem>>, %arg6: memref<1x128xf32, #tpu.memory_space<vmem>>, %arg7: memref<128x128xf32, #tpu.memory_space<vmem>>, %arg8: memref<1x128xf32, #tpu.memory_space<vmem>>, %arg9: memref<128x128xf32, #tpu.memory_space<vmem>>, %arg10: memref<1x128xf32, #tpu.memory_space<vmem>>, %arg11: memref<2x128xf32, #tpu.memory_space<vmem>>) attributes {dimension_semantics = [#tpu.dimension_semantics<arbitrary>], iteration_bounds = array<i64: 1>, scalar_prefetch = 0 : i64, scratch_operands = 0 : i64, tpu.core_type = #tpu.core_type<tc>, window_params = [{pipeline_mode = #tpu.pipeline_mode<synchronous>, transform_indices = @transform_0, window_bounds = array<i64: 8, 2, 4>}, {pipeline_mode = #tpu.pipeline_mode<synchronous>, transform_indices = @transform_1, window_bounds = array<i64: 4, 512>}, {pipeline_mode = #tpu.pipeline_mode<synchronous>, transform_indices = @transform_2, window_bounds = array<i64: 128, 512>}, {pipeline_mode = #tpu.pipeline_mode<synchronous>, transform_indices = @transform_3, window_bounds = array<i64: 1, 512>}, {pipeline_mode = #tpu.pipeline_mode<synchronous>, transform_indices = @transform_4, window_bounds = array<i64: 128, 128>}, {pipeline_mode = #tpu.pipeline_mode<synchronous>, transform_indices = @transform_5, window_bounds = array<i64: 1, 128>}, {pipeline_mode = #tpu.pipeline_mode<synchronous>, transform_indices = @transform_6, window_bounds = array<i64: 128, 128>}, {pipeline_mode = #tpu.pipeline_mode<synchronous>, transform_indices = @transform_7, window_bounds = array<i64: 1, 128>}, {pipeline_mode = #tpu.pipeline_mode<synchronous>, transform_indices = @transform_8, window_bounds = array<i64: 128, 128>}, {pipeline_mode = #tpu.pipeline_mode<synchronous>, transform_indices = @transform_9, window_bounds = array<i64: 1, 128>}, {pipeline_mode = #tpu.pipeline_mode<synchronous>, transform_indices = @transform_10, window_bounds = array<i64: 2, 128>}]} {
    %c0 = arith.constant 0 : index
    %c0_0 = arith.constant 0 : index
    %0 = vector.load %arg2[%c0, %c0_0] : memref<4x512xf32, #tpu.memory_space<vmem>>, vector<4x512xf32>
    %c0_1 = arith.constant 0 : index
    %c0_2 = arith.constant 0 : index
    %1 = vector.load %arg3[%c0_1, %c0_2] : memref<128x512xf32, #tpu.memory_space<vmem>>, vector<128x512xf32>
    %c0_3 = arith.constant 0 : index
    %c0_4 = arith.constant 0 : index
    %2 = vector.load %arg4[%c0_3, %c0_4] : memref<1x512xf32, #tpu.memory_space<vmem>>, vector<1x512xf32>
    %cst = arith.constant 0.000000e+00 : f32
    %3 = vector.broadcast %cst : f32 to vector<2x128xf32>
    %cst_5 = arith.constant 0.000000e+00 : f32
    %4 = vector.broadcast %cst_5 : f32 to vector<2x128xf32>
    %c0_i32 = arith.constant 0 : i32
    %5 = arith.index_cast %c0_i32 : i32 to index
    %c0_6 = arith.constant 0 : index
    %c0_7 = arith.constant 0 : index
    %6 = vector.load %arg1[%5, %c0_6, %c0_7] : memref<8x2x4xf32, #tpu.memory_space<vmem>>, vector<1x2x4xf32>
    %7 = vector.shape_cast %6 : vector<1x2x4xf32> to vector<2x4xf32>
    %cst_8 = arith.constant dense<0.000000e+00> : vector<2x512xf32>
    %8 = tpu.matmul %7, %0, %cst_8 {dimension_numbers = #tpu.dot_dimension_numbers<[1], [0], [0], [1], [0, 0, 1, 1], [], []>} : vector<2x4xf32>, vector<4x512xf32>, vector<2x512xf32> -> vector<2x512xf32>
    %cst_9 = arith.constant dense<0.000000e+00> : vector<2x512xf32>
    %9 = tpu.matmul %3, %1, %cst_9 {dimension_numbers = #tpu.dot_dimension_numbers<[1], [0], [0], [1], [0, 0, 1, 1], [], []>} : vector<2x128xf32>, vector<128x512xf32>, vector<2x512xf32> -> vector<2x512xf32>
    %10 = arith.addf %8, %9 : vector<2x512xf32>
    %11 = vector.broadcast %2 : vector<1x512xf32> to vector<2x512xf32>
    %12 = arith.addf %10, %11 : vector<2x512xf32>
    %13 = vector.extract_strided_slice %12 {offsets = [0, 0], sizes = [2, 128], strides = [1, 1]} : vector<2x512xf32> to vector<2x128xf32>
    %14 = arith.negf %13 : vector<2x128xf32>
    %15 = math.exp %14 : vector<2x128xf32>
    %cst_10 = arith.constant 1.000000e+00 : f32
    %16 = vector.broadcast %cst_10 : f32 to vector<2x128xf32>
    %17 = arith.addf %16, %15 : vector<2x128xf32>
    %18 = arith.divf %16, %17 : vector<2x128xf32>
    %19 = vector.extract_strided_slice %12 {offsets = [0, 128], sizes = [2, 128], strides = [1, 1]} : vector<2x512xf32> to vector<2x128xf32>
    %20 = arith.negf %19 : vector<2x128xf32>
    %21 = math.exp %20 : vector<2x128xf32>
    %cst_11 = arith.constant 1.000000e+00 : f32
    %22 = vector.broadcast %cst_11 : f32 to vector<2x128xf32>
    %23 = arith.addf %22, %21 : vector<2x128xf32>
    %24 = arith.divf %22, %23 : vector<2x128xf32>
    %25 = vector.extract_strided_slice %12 {offsets = [0, 256], sizes = [2, 128], strides = [1, 1]} : vector<2x512xf32> to vector<2x128xf32>
    %26 = math.tanh %25 : vector<2x128xf32>
    %27 = vector.extract_strided_slice %12 {offsets = [0, 384], sizes = [2, 128], strides = [1, 1]} : vector<2x512xf32> to vector<2x128xf32>
    %28 = arith.negf %27 : vector<2x128xf32>
    %29 = math.exp %28 : vector<2x128xf32>
    %cst_12 = arith.constant 1.000000e+00 : f32
    %30 = vector.broadcast %cst_12 : f32 to vector<2x128xf32>
    %31 = arith.addf %30, %29 : vector<2x128xf32>
    %32 = arith.divf %30, %31 : vector<2x128xf32>
    %33 = arith.mulf %24, %4 : vector<2x128xf32>
    %34 = arith.mulf %18, %26 : vector<2x128xf32>
    %35 = arith.addf %33, %34 : vector<2x128xf32>
    %36 = math.tanh %35 : vector<2x128xf32>
    %37 = arith.mulf %32, %36 : vector<2x128xf32>
    %c1_i32 = arith.constant 1 : i32
    %38 = arith.index_cast %c1_i32 : i32 to index
    %c0_13 = arith.constant 0 : index
    %c0_14 = arith.constant 0 : index
    %39 = vector.load %arg1[%38, %c0_13, %c0_14] : memref<8x2x4xf32, #tpu.memory_space<vmem>>, vector<1x2x4xf32>
    %40 = vector.shape_cast %39 : vector<1x2x4xf32> to vector<2x4xf32>
    %cst_15 = arith.constant dense<0.000000e+00> : vector<2x512xf32>
    %41 = tpu.matmul %40, %0, %cst_15 {dimension_numbers = #tpu.dot_dimension_numbers<[1], [0], [0], [1], [0, 0, 1, 1], [], []>} : vector<2x4xf32>, vector<4x512xf32>, vector<2x512xf32> -> vector<2x512xf32>
    %cst_16 = arith.constant dense<0.000000e+00> : vector<2x512xf32>
    %42 = tpu.matmul %37, %1, %cst_16 {dimension_numbers = #tpu.dot_dimension_numbers<[1], [0], [0], [1], [0, 0, 1, 1], [], []>} : vector<2x128xf32>, vector<128x512xf32>, vector<2x512xf32> -> vector<2x512xf32>
    %43 = arith.addf %41, %42 : vector<2x512xf32>
    %44 = vector.broadcast %2 : vector<1x512xf32> to vector<2x512xf32>
    %45 = arith.addf %43, %44 : vector<2x512xf32>
    %46 = vector.extract_strided_slice %45 {offsets = [0, 0], sizes = [2, 128], strides = [1, 1]} : vector<2x512xf32> to vector<2x128xf32>
    %47 = arith.negf %46 : vector<2x128xf32>
    %48 = math.exp %47 : vector<2x128xf32>
    %cst_17 = arith.constant 1.000000e+00 : f32
    %49 = vector.broadcast %cst_17 : f32 to vector<2x128xf32>
    %50 = arith.addf %49, %48 : vector<2x128xf32>
    %51 = arith.divf %49, %50 : vector<2x128xf32>
    %52 = vector.extract_strided_slice %45 {offsets = [0, 128], sizes = [2, 128], strides = [1, 1]} : vector<2x512xf32> to vector<2x128xf32>
    %53 = arith.negf %52 : vector<2x128xf32>
    %54 = math.exp %53 : vector<2x128xf32>
    %cst_18 = arith.constant 1.000000e+00 : f32
    %55 = vector.broadcast %cst_18 : f32 to vector<2x128xf32>
    %56 = arith.addf %55, %54 : vector<2x128xf32>
    %57 = arith.divf %55, %56 : vector<2x128xf32>
    %58 = vector.extract_strided_slice %45 {offsets = [0, 256], sizes = [2, 128], strides = [1, 1]} : vector<2x512xf32> to vector<2x128xf32>
    %59 = math.tanh %58 : vector<2x128xf32>
    %60 = vector.extract_strided_slice %45 {offsets = [0, 384], sizes = [2, 128], strides = [1, 1]} : vector<2x512xf32> to vector<2x128xf32>
    %61 = arith.negf %60 : vector<2x128xf32>
    %62 = math.exp %61 : vector<2x128xf32>
    %cst_19 = arith.constant 1.000000e+00 : f32
    %63 = vector.broadcast %cst_19 : f32 to vector<2x128xf32>
    %64 = arith.addf %63, %62 : vector<2x128xf32>
    %65 = arith.divf %63, %64 : vector<2x128xf32>
    %66 = arith.mulf %57, %35 : vector<2x128xf32>
    %67 = arith.mulf %51, %59 : vector<2x128xf32>
    %68 = arith.addf %66, %67 : vector<2x128xf32>
    %69 = math.tanh %68 : vector<2x128xf32>
    %70 = arith.mulf %65, %69 : vector<2x128xf32>
    %c2_i32 = arith.constant 2 : i32
    %71 = arith.index_cast %c2_i32 : i32 to index
    %c0_20 = arith.constant 0 : index
    %c0_21 = arith.constant 0 : index
    %72 = vector.load %arg1[%71, %c0_20, %c0_21] : memref<8x2x4xf32, #tpu.memory_space<vmem>>, vector<1x2x4xf32>
    %73 = vector.shape_cast %72 : vector<1x2x4xf32> to vector<2x4xf32>
    %cst_22 = arith.constant dense<0.000000e+00> : vector<2x512xf32>
    %74 = tpu.matmul %73, %0, %cst_22 {dimension_numbers = #tpu.dot_dimension_numbers<[1], [0], [0], [1], [0, 0, 1, 1], [], []>} : vector<2x4xf32>, vector<4x512xf32>, vector<2x512xf32> -> vector<2x512xf32>
    %cst_23 = arith.constant dense<0.000000e+00> : vector<2x512xf32>
    %75 = tpu.matmul %70, %1, %cst_23 {dimension_numbers = #tpu.dot_dimension_numbers<[1], [0], [0], [1], [0, 0, 1, 1], [], []>} : vector<2x128xf32>, vector<128x512xf32>, vector<2x512xf32> -> vector<2x512xf32>
    %76 = arith.addf %74, %75 : vector<2x512xf32>
    %77 = vector.broadcast %2 : vector<1x512xf32> to vector<2x512xf32>
    %78 = arith.addf %76, %77 : vector<2x512xf32>
    %79 = vector.extract_strided_slice %78 {offsets = [0, 0], sizes = [2, 128], strides = [1, 1]} : vector<2x512xf32> to vector<2x128xf32>
    %80 = arith.negf %79 : vector<2x128xf32>
    %81 = math.exp %80 : vector<2x128xf32>
    %cst_24 = arith.constant 1.000000e+00 : f32
    %82 = vector.broadcast %cst_24 : f32 to vector<2x128xf32>
    %83 = arith.addf %82, %81 : vector<2x128xf32>
    %84 = arith.divf %82, %83 : vector<2x128xf32>
    %85 = vector.extract_strided_slice %78 {offsets = [0, 128], sizes = [2, 128], strides = [1, 1]} : vector<2x512xf32> to vector<2x128xf32>
    %86 = arith.negf %85 : vector<2x128xf32>
    %87 = math.exp %86 : vector<2x128xf32>
    %cst_25 = arith.constant 1.000000e+00 : f32
    %88 = vector.broadcast %cst_25 : f32 to vector<2x128xf32>
    %89 = arith.addf %88, %87 : vector<2x128xf32>
    %90 = arith.divf %88, %89 : vector<2x128xf32>
    %91 = vector.extract_strided_slice %78 {offsets = [0, 256], sizes = [2, 128], strides = [1, 1]} : vector<2x512xf32> to vector<2x128xf32>
    %92 = math.tanh %91 : vector<2x128xf32>
    %93 = vector.extract_strided_slice %78 {offsets = [0, 384], sizes = [2, 128], strides = [1, 1]} : vector<2x512xf32> to vector<2x128xf32>
    %94 = arith.negf %93 : vector<2x128xf32>
    %95 = math.exp %94 : vector<2x128xf32>
    %cst_26 = arith.constant 1.000000e+00 : f32
    %96 = vector.broadcast %cst_26 : f32 to vector<2x128xf32>
    %97 = arith.addf %96, %95 : vector<2x128xf32>
    %98 = arith.divf %96, %97 : vector<2x128xf32>
    %99 = arith.mulf %90, %68 : vector<2x128xf32>
    %100 = arith.mulf %84, %92 : vector<2x128xf32>
    %101 = arith.addf %99, %100 : vector<2x128xf32>
    %102 = math.tanh %101 : vector<2x128xf32>
    %103 = arith.mulf %98, %102 : vector<2x128xf32>
    %c3_i32 = arith.constant 3 : i32
    %104 = arith.index_cast %c3_i32 : i32 to index
    %c0_27 = arith.constant 0 : index
    %c0_28 = arith.constant 0 : index
    %105 = vector.load %arg1[%104, %c0_27, %c0_28] : memref<8x2x4xf32, #tpu.memory_space<vmem>>, vector<1x2x4xf32>
    %106 = vector.shape_cast %105 : vector<1x2x4xf32> to vector<2x4xf32>
    %cst_29 = arith.constant dense<0.000000e+00> : vector<2x512xf32>
    %107 = tpu.matmul %106, %0, %cst_29 {dimension_numbers = #tpu.dot_dimension_numbers<[1], [0], [0], [1], [0, 0, 1, 1], [], []>} : vector<2x4xf32>, vector<4x512xf32>, vector<2x512xf32> -> vector<2x512xf32>
    %cst_30 = arith.constant dense<0.000000e+00> : vector<2x512xf32>
    %108 = tpu.matmul %103, %1, %cst_30 {dimension_numbers = #tpu.dot_dimension_numbers<[1], [0], [0], [1], [0, 0, 1, 1], [], []>} : vector<2x128xf32>, vector<128x512xf32>, vector<2x512xf32> -> vector<2x512xf32>
    %109 = arith.addf %107, %108 : vector<2x512xf32>
    %110 = vector.broadcast %2 : vector<1x512xf32> to vector<2x512xf32>
    %111 = arith.addf %109, %110 : vector<2x512xf32>
    %112 = vector.extract_strided_slice %111 {offsets = [0, 0], sizes = [2, 128], strides = [1, 1]} : vector<2x512xf32> to vector<2x128xf32>
    %113 = arith.negf %112 : vector<2x128xf32>
    %114 = math.exp %113 : vector<2x128xf32>
    %cst_31 = arith.constant 1.000000e+00 : f32
    %115 = vector.broadcast %cst_31 : f32 to vector<2x128xf32>
    %116 = arith.addf %115, %114 : vector<2x128xf32>
    %117 = arith.divf %115, %116 : vector<2x128xf32>
    %118 = vector.extract_strided_slice %111 {offsets = [0, 128], sizes = [2, 128], strides = [1, 1]} : vector<2x512xf32> to vector<2x128xf32>
    %119 = arith.negf %118 : vector<2x128xf32>
    %120 = math.exp %119 : vector<2x128xf32>
    %cst_32 = arith.constant 1.000000e+00 : f32
    %121 = vector.broadcast %cst_32 : f32 to vector<2x128xf32>
    %122 = arith.addf %121, %120 : vector<2x128xf32>
    %123 = arith.divf %121, %122 : vector<2x128xf32>
    %124 = vector.extract_strided_slice %111 {offsets = [0, 256], sizes = [2, 128], strides = [1, 1]} : vector<2x512xf32> to vector<2x128xf32>
    %125 = math.tanh %124 : vector<2x128xf32>
    %126 = vector.extract_strided_slice %111 {offsets = [0, 384], sizes = [2, 128], strides = [1, 1]} : vector<2x512xf32> to vector<2x128xf32>
    %127 = arith.negf %126 : vector<2x128xf32>
    %128 = math.exp %127 : vector<2x128xf32>
    %cst_33 = arith.constant 1.000000e+00 : f32
    %129 = vector.broadcast %cst_33 : f32 to vector<2x128xf32>
    %130 = arith.addf %129, %128 : vector<2x128xf32>
    %131 = arith.divf %129, %130 : vector<2x128xf32>
    %132 = arith.mulf %123, %101 : vector<2x128xf32>
    %133 = arith.mulf %117, %125 : vector<2x128xf32>
    %134 = arith.addf %132, %133 : vector<2x128xf32>
    %135 = math.tanh %134 : vector<2x128xf32>
    %136 = arith.mulf %131, %135 : vector<2x128xf32>
    %c4_i32 = arith.constant 4 : i32
    %137 = arith.index_cast %c4_i32 : i32 to index
    %c0_34 = arith.constant 0 : index
    %c0_35 = arith.constant 0 : index
    %138 = vector.load %arg1[%137, %c0_34, %c0_35] : memref<8x2x4xf32, #tpu.memory_space<vmem>>, vector<1x2x4xf32>
    %139 = vector.shape_cast %138 : vector<1x2x4xf32> to vector<2x4xf32>
    %cst_36 = arith.constant dense<0.000000e+00> : vector<2x512xf32>
    %140 = tpu.matmul %139, %0, %cst_36 {dimension_numbers = #tpu.dot_dimension_numbers<[1], [0], [0], [1], [0, 0, 1, 1], [], []>} : vector<2x4xf32>, vector<4x512xf32>, vector<2x512xf32> -> vector<2x512xf32>
    %cst_37 = arith.constant dense<0.000000e+00> : vector<2x512xf32>
    %141 = tpu.matmul %136, %1, %cst_37 {dimension_numbers = #tpu.dot_dimension_numbers<[1], [0], [0], [1], [0, 0, 1, 1], [], []>} : vector<2x128xf32>, vector<128x512xf32>, vector<2x512xf32> -> vector<2x512xf32>
    %142 = arith.addf %140, %141 : vector<2x512xf32>
    %143 = vector.broadcast %2 : vector<1x512xf32> to vector<2x512xf32>
    %144 = arith.addf %142, %143 : vector<2x512xf32>
    %145 = vector.extract_strided_slice %144 {offsets = [0, 0], sizes = [2, 128], strides = [1, 1]} : vector<2x512xf32> to vector<2x128xf32>
    %146 = arith.negf %145 : vector<2x128xf32>
    %147 = math.exp %146 : vector<2x128xf32>
    %cst_38 = arith.constant 1.000000e+00 : f32
    %148 = vector.broadcast %cst_38 : f32 to vector<2x128xf32>
    %149 = arith.addf %148, %147 : vector<2x128xf32>
    %150 = arith.divf %148, %149 : vector<2x128xf32>
    %151 = vector.extract_strided_slice %144 {offsets = [0, 128], sizes = [2, 128], strides = [1, 1]} : vector<2x512xf32> to vector<2x128xf32>
    %152 = arith.negf %151 : vector<2x128xf32>
    %153 = math.exp %152 : vector<2x128xf32>
    %cst_39 = arith.constant 1.000000e+00 : f32
    %154 = vector.broadcast %cst_39 : f32 to vector<2x128xf32>
    %155 = arith.addf %154, %153 : vector<2x128xf32>
    %156 = arith.divf %154, %155 : vector<2x128xf32>
    %157 = vector.extract_strided_slice %144 {offsets = [0, 256], sizes = [2, 128], strides = [1, 1]} : vector<2x512xf32> to vector<2x128xf32>
    %158 = math.tanh %157 : vector<2x128xf32>
    %159 = vector.extract_strided_slice %144 {offsets = [0, 384], sizes = [2, 128], strides = [1, 1]} : vector<2x512xf32> to vector<2x128xf32>
    %160 = arith.negf %159 : vector<2x128xf32>
    %161 = math.exp %160 : vector<2x128xf32>
    %cst_40 = arith.constant 1.000000e+00 : f32
    %162 = vector.broadcast %cst_40 : f32 to vector<2x128xf32>
    %163 = arith.addf %162, %161 : vector<2x128xf32>
    %164 = arith.divf %162, %163 : vector<2x128xf32>
    %165 = arith.mulf %156, %134 : vector<2x128xf32>
    %166 = arith.mulf %150, %158 : vector<2x128xf32>
    %167 = arith.addf %165, %166 : vector<2x128xf32>
    %168 = math.tanh %167 : vector<2x128xf32>
    %169 = arith.mulf %164, %168 : vector<2x128xf32>
    %c5_i32 = arith.constant 5 : i32
    %170 = arith.index_cast %c5_i32 : i32 to index
    %c0_41 = arith.constant 0 : index
    %c0_42 = arith.constant 0 : index
    %171 = vector.load %arg1[%170, %c0_41, %c0_42] : memref<8x2x4xf32, #tpu.memory_space<vmem>>, vector<1x2x4xf32>
    %172 = vector.shape_cast %171 : vector<1x2x4xf32> to vector<2x4xf32>
    %cst_43 = arith.constant dense<0.000000e+00> : vector<2x512xf32>
    %173 = tpu.matmul %172, %0, %cst_43 {dimension_numbers = #tpu.dot_dimension_numbers<[1], [0], [0], [1], [0, 0, 1, 1], [], []>} : vector<2x4xf32>, vector<4x512xf32>, vector<2x512xf32> -> vector<2x512xf32>
    %cst_44 = arith.constant dense<0.000000e+00> : vector<2x512xf32>
    %174 = tpu.matmul %169, %1, %cst_44 {dimension_numbers = #tpu.dot_dimension_numbers<[1], [0], [0], [1], [0, 0, 1, 1], [], []>} : vector<2x128xf32>, vector<128x512xf32>, vector<2x512xf32> -> vector<2x512xf32>
    %175 = arith.addf %173, %174 : vector<2x512xf32>
    %176 = vector.broadcast %2 : vector<1x512xf32> to vector<2x512xf32>
    %177 = arith.addf %175, %176 : vector<2x512xf32>
    %178 = vector.extract_strided_slice %177 {offsets = [0, 0], sizes = [2, 128], strides = [1, 1]} : vector<2x512xf32> to vector<2x128xf32>
    %179 = arith.negf %178 : vector<2x128xf32>
    %180 = math.exp %179 : vector<2x128xf32>
    %cst_45 = arith.constant 1.000000e+00 : f32
    %181 = vector.broadcast %cst_45 : f32 to vector<2x128xf32>
    %182 = arith.addf %181, %180 : vector<2x128xf32>
    %183 = arith.divf %181, %182 : vector<2x128xf32>
    %184 = vector.extract_strided_slice %177 {offsets = [0, 128], sizes = [2, 128], strides = [1, 1]} : vector<2x512xf32> to vector<2x128xf32>
    %185 = arith.negf %184 : vector<2x128xf32>
    %186 = math.exp %185 : vector<2x128xf32>
    %cst_46 = arith.constant 1.000000e+00 : f32
    %187 = vector.broadcast %cst_46 : f32 to vector<2x128xf32>
    %188 = arith.addf %187, %186 : vector<2x128xf32>
    %189 = arith.divf %187, %188 : vector<2x128xf32>
    %190 = vector.extract_strided_slice %177 {offsets = [0, 256], sizes = [2, 128], strides = [1, 1]} : vector<2x512xf32> to vector<2x128xf32>
    %191 = math.tanh %190 : vector<2x128xf32>
    %192 = vector.extract_strided_slice %177 {offsets = [0, 384], sizes = [2, 128], strides = [1, 1]} : vector<2x512xf32> to vector<2x128xf32>
    %193 = arith.negf %192 : vector<2x128xf32>
    %194 = math.exp %193 : vector<2x128xf32>
    %cst_47 = arith.constant 1.000000e+00 : f32
    %195 = vector.broadcast %cst_47 : f32 to vector<2x128xf32>
    %196 = arith.addf %195, %194 : vector<2x128xf32>
    %197 = arith.divf %195, %196 : vector<2x128xf32>
    %198 = arith.mulf %189, %167 : vector<2x128xf32>
    %199 = arith.mulf %183, %191 : vector<2x128xf32>
    %200 = arith.addf %198, %199 : vector<2x128xf32>
    %201 = math.tanh %200 : vector<2x128xf32>
    %202 = arith.mulf %197, %201 : vector<2x128xf32>
    %c6_i32 = arith.constant 6 : i32
    %203 = arith.index_cast %c6_i32 : i32 to index
    %c0_48 = arith.constant 0 : index
    %c0_49 = arith.constant 0 : index
    %204 = vector.load %arg1[%203, %c0_48, %c0_49] : memref<8x2x4xf32, #tpu.memory_space<vmem>>, vector<1x2x4xf32>
    %205 = vector.shape_cast %204 : vector<1x2x4xf32> to vector<2x4xf32>
    %cst_50 = arith.constant dense<0.000000e+00> : vector<2x512xf32>
    %206 = tpu.matmul %205, %0, %cst_50 {dimension_numbers = #tpu.dot_dimension_numbers<[1], [0], [0], [1], [0, 0, 1, 1], [], []>} : vector<2x4xf32>, vector<4x512xf32>, vector<2x512xf32> -> vector<2x512xf32>
    %cst_51 = arith.constant dense<0.000000e+00> : vector<2x512xf32>
    %207 = tpu.matmul %202, %1, %cst_51 {dimension_numbers = #tpu.dot_dimension_numbers<[1], [0], [0], [1], [0, 0, 1, 1], [], []>} : vector<2x128xf32>, vector<128x512xf32>, vector<2x512xf32> -> vector<2x512xf32>
    %208 = arith.addf %206, %207 : vector<2x512xf32>
    %209 = vector.broadcast %2 : vector<1x512xf32> to vector<2x512xf32>
    %210 = arith.addf %208, %209 : vector<2x512xf32>
    %211 = vector.extract_strided_slice %210 {offsets = [0, 0], sizes = [2, 128], strides = [1, 1]} : vector<2x512xf32> to vector<2x128xf32>
    %212 = arith.negf %211 : vector<2x128xf32>
    %213 = math.exp %212 : vector<2x128xf32>
    %cst_52 = arith.constant 1.000000e+00 : f32
    %214 = vector.broadcast %cst_52 : f32 to vector<2x128xf32>
    %215 = arith.addf %214, %213 : vector<2x128xf32>
    %216 = arith.divf %214, %215 : vector<2x128xf32>
    %217 = vector.extract_strided_slice %210 {offsets = [0, 128], sizes = [2, 128], strides = [1, 1]} : vector<2x512xf32> to vector<2x128xf32>
    %218 = arith.negf %217 : vector<2x128xf32>
    %219 = math.exp %218 : vector<2x128xf32>
    %cst_53 = arith.constant 1.000000e+00 : f32
    %220 = vector.broadcast %cst_53 : f32 to vector<2x128xf32>
    %221 = arith.addf %220, %219 : vector<2x128xf32>
    %222 = arith.divf %220, %221 : vector<2x128xf32>
    %223 = vector.extract_strided_slice %210 {offsets = [0, 256], sizes = [2, 128], strides = [1, 1]} : vector<2x512xf32> to vector<2x128xf32>
    %224 = math.tanh %223 : vector<2x128xf32>
    %225 = vector.extract_strided_slice %210 {offsets = [0, 384], sizes = [2, 128], strides = [1, 1]} : vector<2x512xf32> to vector<2x128xf32>
    %226 = arith.negf %225 : vector<2x128xf32>
    %227 = math.exp %226 : vector<2x128xf32>
    %cst_54 = arith.constant 1.000000e+00 : f32
    %228 = vector.broadcast %cst_54 : f32 to vector<2x128xf32>
    %229 = arith.addf %228, %227 : vector<2x128xf32>
    %230 = arith.divf %228, %229 : vector<2x128xf32>
    %231 = arith.mulf %222, %200 : vector<2x128xf32>
    %232 = arith.mulf %216, %224 : vector<2x128xf32>
    %233 = arith.addf %231, %232 : vector<2x128xf32>
    %234 = math.tanh %233 : vector<2x128xf32>
    %235 = arith.mulf %230, %234 : vector<2x128xf32>
    %c7_i32 = arith.constant 7 : i32
    %236 = arith.index_cast %c7_i32 : i32 to index
    %c0_55 = arith.constant 0 : index
    %c0_56 = arith.constant 0 : index
    %237 = vector.load %arg1[%236, %c0_55, %c0_56] : memref<8x2x4xf32, #tpu.memory_space<vmem>>, vector<1x2x4xf32>
    %238 = vector.shape_cast %237 : vector<1x2x4xf32> to vector<2x4xf32>
    %cst_57 = arith.constant dense<0.000000e+00> : vector<2x512xf32>
    %239 = tpu.matmul %238, %0, %cst_57 {dimension_numbers = #tpu.dot_dimension_numbers<[1], [0], [0], [1], [0, 0, 1, 1], [], []>} : vector<2x4xf32>, vector<4x512xf32>, vector<2x512xf32> -> vector<2x512xf32>
    %cst_58 = arith.constant dense<0.000000e+00> : vector<2x512xf32>
    %240 = tpu.matmul %235, %1, %cst_58 {dimension_numbers = #tpu.dot_dimension_numbers<[1], [0], [0], [1], [0, 0, 1, 1], [], []>} : vector<2x128xf32>, vector<128x512xf32>, vector<2x512xf32> -> vector<2x512xf32>
    %241 = arith.addf %239, %240 : vector<2x512xf32>
    %242 = vector.broadcast %2 : vector<1x512xf32> to vector<2x512xf32>
    %243 = arith.addf %241, %242 : vector<2x512xf32>
    %244 = vector.extract_strided_slice %243 {offsets = [0, 0], sizes = [2, 128], strides = [1, 1]} : vector<2x512xf32> to vector<2x128xf32>
    %245 = arith.negf %244 : vector<2x128xf32>
    %246 = math.exp %245 : vector<2x128xf32>
    %cst_59 = arith.constant 1.000000e+00 : f32
    %247 = vector.broadcast %cst_59 : f32 to vector<2x128xf32>
    %248 = arith.addf %247, %246 : vector<2x128xf32>
    %249 = arith.divf %247, %248 : vector<2x128xf32>
    %250 = vector.extract_strided_slice %243 {offsets = [0, 128], sizes = [2, 128], strides = [1, 1]} : vector<2x512xf32> to vector<2x128xf32>
    %251 = arith.negf %250 : vector<2x128xf32>
    %252 = math.exp %251 : vector<2x128xf32>
    %cst_60 = arith.constant 1.000000e+00 : f32
    %253 = vector.broadcast %cst_60 : f32 to vector<2x128xf32>
    %254 = arith.addf %253, %252 : vector<2x128xf32>
    %255 = arith.divf %253, %254 : vector<2x128xf32>
    %256 = vector.extract_strided_slice %243 {offsets = [0, 256], sizes = [2, 128], strides = [1, 1]} : vector<2x512xf32> to vector<2x128xf32>
    %257 = math.tanh %256 : vector<2x128xf32>
    %258 = vector.extract_strided_slice %243 {offsets = [0, 384], sizes = [2, 128], strides = [1, 1]} : vector<2x512xf32> to vector<2x128xf32>
    %259 = arith.negf %258 : vector<2x128xf32>
    %260 = math.exp %259 : vector<2x128xf32>
    %cst_61 = arith.constant 1.000000e+00 : f32
    %261 = vector.broadcast %cst_61 : f32 to vector<2x128xf32>
    %262 = arith.addf %261, %260 : vector<2x128xf32>
    %263 = arith.divf %261, %262 : vector<2x128xf32>
    %264 = arith.mulf %255, %233 : vector<2x128xf32>
    %265 = arith.mulf %249, %257 : vector<2x128xf32>
    %266 = arith.addf %264, %265 : vector<2x128xf32>
    %267 = math.tanh %266 : vector<2x128xf32>
    %268 = arith.mulf %263, %267 : vector<2x128xf32>
    %c8_i32 = arith.constant 8 : i32
    %cst_62 = arith.constant 0.000000e+00 : f32
    %269 = vector.broadcast %cst_62 : f32 to vector<2x128xf32>
    %270 = arith.maximumf %268, %269 : vector<2x128xf32>
    %c0_63 = arith.constant 0 : index
    %c0_64 = arith.constant 0 : index
    %271 = vector.load %arg5[%c0_63, %c0_64] : memref<128x128xf32, #tpu.memory_space<vmem>>, vector<128x128xf32>
    %cst_65 = arith.constant dense<0.000000e+00> : vector<2x128xf32>
    %272 = tpu.matmul %270, %271, %cst_65 {dimension_numbers = #tpu.dot_dimension_numbers<[1], [0], [0], [1], [0, 0, 1, 1], [], []>} : vector<2x128xf32>, vector<128x128xf32>, vector<2x128xf32> -> vector<2x128xf32>
    %c0_66 = arith.constant 0 : index
    %c0_67 = arith.constant 0 : index
    %273 = vector.load %arg6[%c0_66, %c0_67] : memref<1x128xf32, #tpu.memory_space<vmem>>, vector<1x128xf32>
    %274 = vector.broadcast %273 : vector<1x128xf32> to vector<2x128xf32>
    %275 = arith.addf %272, %274 : vector<2x128xf32>
    %cst_68 = arith.constant 0.000000e+00 : f32
    %276 = vector.broadcast %cst_68 : f32 to vector<2x128xf32>
    %277 = arith.maximumf %275, %276 : vector<2x128xf32>
    %c0_69 = arith.constant 0 : index
    %c0_70 = arith.constant 0 : index
    %278 = vector.load %arg7[%c0_69, %c0_70] : memref<128x128xf32, #tpu.memory_space<vmem>>, vector<128x128xf32>
    %cst_71 = arith.constant dense<0.000000e+00> : vector<2x128xf32>
    %279 = tpu.matmul %277, %278, %cst_71 {dimension_numbers = #tpu.dot_dimension_numbers<[1], [0], [0], [1], [0, 0, 1, 1], [], []>} : vector<2x128xf32>, vector<128x128xf32>, vector<2x128xf32> -> vector<2x128xf32>
    %c0_72 = arith.constant 0 : index
    %c0_73 = arith.constant 0 : index
    %280 = vector.load %arg8[%c0_72, %c0_73] : memref<1x128xf32, #tpu.memory_space<vmem>>, vector<1x128xf32>
    %281 = vector.broadcast %280 : vector<1x128xf32> to vector<2x128xf32>
    %282 = arith.addf %279, %281 : vector<2x128xf32>
    %c0_74 = arith.constant 0 : index
    %c0_75 = arith.constant 0 : index
    %283 = vector.load %arg9[%c0_74, %c0_75] : memref<128x128xf32, #tpu.memory_space<vmem>>, vector<128x128xf32>
    %cst_76 = arith.constant dense<0.000000e+00> : vector<2x128xf32>
    %284 = tpu.matmul %282, %283, %cst_76 {dimension_numbers = #tpu.dot_dimension_numbers<[1], [0], [0], [1], [0, 0, 1, 1], [], []>} : vector<2x128xf32>, vector<128x128xf32>, vector<2x128xf32> -> vector<2x128xf32>
    %c0_77 = arith.constant 0 : index
    %c0_78 = arith.constant 0 : index
    %285 = vector.load %arg10[%c0_77, %c0_78] : memref<1x128xf32, #tpu.memory_space<vmem>>, vector<1x128xf32>
    %286 = vector.broadcast %285 : vector<1x128xf32> to vector<2x128xf32>
    %287 = arith.addf %284, %286 : vector<2x128xf32>
    %c0_79 = arith.constant 0 : index
    %c0_80 = arith.constant 0 : index
    %288 = vector.load %arg11[%c0_79, %c0_80] : memref<2x128xf32, #tpu.memory_space<vmem>>, vector<2x128xf32>
    tpu.vector_store %arg11[%c0_79, %c0_80], %287 {strides = array<i32>} : memref<2x128xf32, #tpu.memory_space<vmem>>, vector<2x128xf32>,
    return
  }
  func.func @transform_0(%arg0: i32) -> (i32, i32, i32) {
    %c0_i32 = arith.constant 0 : i32
    %c0_i32_0 = arith.constant 0 : i32
    %c0_i32_1 = arith.constant 0 : i32
    %c0_i32_2 = arith.constant 0 : i32
    return %c0_i32, %c0_i32_0, %c0_i32_1 : i32, i32, i32
  }
  func.func @transform_1(%arg0: i32) -> (i32, i32) {
    %c0_i32 = arith.constant 0 : i32
    %c0_i32_0 = arith.constant 0 : i32
    %c0_i32_1 = arith.constant 0 : i32
    return %c0_i32, %c0_i32_0 : i32, i32
  }
  func.func @transform_2(%arg0: i32) -> (i32, i32) {
    %c0_i32 = arith.constant 0 : i32
    %c0_i32_0 = arith.constant 0 : i32
    %c0_i32_1 = arith.constant 0 : i32
    return %c0_i32, %c0_i32_0 : i32, i32
  }
  func.func @transform_3(%arg0: i32) -> (i32, i32) {
    %c0_i32 = arith.constant 0 : i32
    %c0_i32_0 = arith.constant 0 : i32
    %c0_i32_1 = arith.constant 0 : i32
    return %c0_i32, %c0_i32_0 : i32, i32
  }
  func.func @transform_4(%arg0: i32) -> (i32, i32) {
    %c0_i32 = arith.constant 0 : i32
    %c0_i32_0 = arith.constant 0 : i32
    %c0_i32_1 = arith.constant 0 : i32
    return %c0_i32, %c0_i32_0 : i32, i32
  }
  func.func @transform_5(%arg0: i32) -> (i32, i32) {
    %c0_i32 = arith.constant 0 : i32
    %c0_i32_0 = arith.constant 0 : i32
    %c0_i32_1 = arith.constant 0 : i32
    return %c0_i32, %c0_i32_0 : i32, i32
  }
  func.func @transform_6(%arg0: i32) -> (i32, i32) {
    %c0_i32 = arith.constant 0 : i32
    %c0_i32_0 = arith.constant 0 : i32
    %c0_i32_1 = arith.constant 0 : i32
    return %c0_i32, %c0_i32_0 : i32, i32
  }
  func.func @transform_7(%arg0: i32) -> (i32, i32) {
    %c0_i32 = arith.constant 0 : i32
    %c0_i32_0 = arith.constant 0 : i32
    %c0_i32_1 = arith.constant 0 : i32
    return %c0_i32, %c0_i32_0 : i32, i32
  }
  func.func @transform_8(%arg0: i32) -> (i32, i32) {
    %c0_i32 = arith.constant 0 : i32
    %c0_i32_0 = arith.constant 0 : i32
    %c0_i32_1 = arith.constant 0 : i32
    return %c0_i32, %c0_i32_0 : i32, i32
  }
  func.func @transform_9(%arg0: i32) -> (i32, i32) {
    %c0_i32 = arith.constant 0 : i32
    %c0_i32_0 = arith.constant 0 : i32
    %c0_i32_1 = arith.constant 0 : i32
    return %c0_i32, %c0_i32_0 : i32, i32
  }
  func.func @transform_10(%arg0: i32) -> (i32, i32) {
    %c0_i32 = arith.constant 0 : i32
    %c0_i32_0 = arith.constant 0 : i32
    %c0_i32_1 = arith.constant 0 : i32
    return %c0_i32, %c0_i32_0 : i32, i32
  }
}

</mosaic_0001>

<llo_original>
// kernel: tpu_custom_call.1
$region0: #{tpu_custom_call.1}
  #allocation0 [shape = 'u32[]', space=smem, size = 0x4, offset = 0x4, fixed_abs, tag = 'smem constant byte address 0x4 - core index']
  #allocation1 [shape = 'u32[72,128]{1,0:T(1,128)}', space=vmem, size = 0x9000, scoped, tag = 'internal scratch']
  %s0 = inlined_call_operand.vmem [shape: f32[8,2,4], index: 0, kind: input, shape index: {}]
  %s1 = inlined_call_operand.vmem [shape: f32[4,512], index: 1, kind: input, shape index: {}]
  %s2 = inlined_call_operand.hbm [shape: f32[128,512], index: 2, kind: input, shape index: {}]
  %s3 = inlined_call_operand.vmem [shape: f32[1,512], index: 3, kind: input, shape index: {}]
  %s4 = inlined_call_operand.hbm [shape: f32[128,128], index: 4, kind: input, shape index: {}]
  %s5 = inlined_call_operand.vmem [shape: f32[1,128], index: 5, kind: input, shape index: {}]
  %s6 = inlined_call_operand.hbm [shape: f32[128,128], index: 6, kind: input, shape index: {}]
  %s7 = inlined_call_operand.vmem [shape: f32[1,128], index: 7, kind: input, shape index: {}]
  %s8 = inlined_call_operand.hbm [shape: f32[128,128], index: 8, kind: input, shape index: {}]
  %s9 = inlined_call_operand.vmem [shape: f32[1,128], index: 9, kind: input, shape index: {}]
  %s10 = inlined_call_operand.hbm [shape: f32[2,128], index: 10, kind: output, shape index: {}]
  %s11 = sld [smem:[#allocation0]]
  $region66: #{tpu_custom_call.1} parent=0
    _
  %s13 = ssub.s32 1, %s11
  %s14 = scalar_select 0, %s13, %s11
  $region1: #{tpu_custom_call.1} parent=0
    #allocation2 [shape = 'u8[262144]{0}', space=vmem, size = 0x40000, scoped, tag = 'input window, operand 2, single buffered']
    #allocation3 [shape = 's32[1]{0}', space=sflag, size = 0x4, scoped, tag = 'scoped memory for tpu_custom_call.1']
    #allocation4 [shape = 's32[1]{0}', space=sflag, size = 0x4, scoped, tag = 'scoped memory for tpu_custom_call.1']
    #allocation5 [shape = 'u8[65536]{0}', space=vmem, size = 0x10000, scoped, tag = 'input window, operand 4, single buffered']
    #allocation6 [shape = 's32[1]{0}', space=sflag, size = 0x4, scoped, tag = 'scoped memory for tpu_custom_call.1']
    #allocation7 [shape = 'u8[65536]{0}', space=vmem, size = 0x10000, scoped, tag = 'input window, operand 6, single buffered']
    #allocation8 [shape = 'u8[65536]{0}', space=vmem, size = 0x10000, scoped, tag = 'input window, operand 8, single buffered']
    #allocation9 [shape = 's32[1]{0}', space=sflag, size = 0x4, scoped, tag = 'scoped memory for tpu_custom_call.1']
    #allocation10 [shape = 'u8[1024]{0}', space=vmem, size = 0x400, scoped, tag = 'output window, operand 0, single buffered']
    %15 = vsyncpa [#allocation3], 0
    %16 = vsyncpa [#allocation6], 0
    %17 = vsyncpa [#allocation9], 0
    %18 = vsyncpa [#allocation4], 0
    // Predicated region
    $region2: #{tpu_custom_call.1} parent=1 // pred_check
      _
    $region3: #{tpu_custom_call.1} parent=1 // pred_check_branch
      %20 = sbr.rel (0) target = $region5
    $region4: #{tpu_custom_call.1} parent=1 // pred_region
      _
    $region5: #{tpu_custom_call.1} parent=1 // pred_fallthru
      _
    // Predicated region
    $region6: #{tpu_custom_call.1} parent=1 // pred_check
      _
    $region7: #{tpu_custom_call.1} parent=1 // pred_check_branch
      %22 = sbr.rel (0) target = $region9
    $region8: #{tpu_custom_call.1} parent=1 // pred_region
      _
    $region9: #{tpu_custom_call.1} parent=1 // pred_fallthru
      _
    // Predicated region
    $region10: #{tpu_custom_call.1} parent=1 // pred_check
      _
    $region11: #{tpu_custom_call.1} parent=1 // pred_check_branch
      %24 = sbr.rel (0) target = $region13
    $region12: #{tpu_custom_call.1} parent=1 // pred_region
      %26 = vsyncadd [#allocation3], 0
      %s27 = sshll.u32 %s2, 4
      %s28 = int_to_ptr.hbm [resolvable:$true] %s27
      %s29 = sshll.u32 [#allocation2], 4
      %s30 = int_to_ptr.vmem [resolvable:$true] %s29
      %35 = dma.hbm_to_vmem [thread:$0]  %s28, 8192, %s30, [#allocation3], 512, 512, 32
    $region13: #{tpu_custom_call.1} parent=1 // pred_fallthru
      _
    // Predicated region
    $region14: #{tpu_custom_call.1} parent=1 // pred_check
      _
    $region15: #{tpu_custom_call.1} parent=1 // pred_check_branch
      %37 = sbr.rel (0) target = $region17
    $region16: #{tpu_custom_call.1} parent=1 // pred_region
      _
    $region17: #{tpu_custom_call.1} parent=1 // pred_fallthru
      _
    // Predicated region
    $region18: #{tpu_custom_call.1} parent=1 // pred_check
      _
    $region19: #{tpu_custom_call.1} parent=1 // pred_check_branch
      %39 = sbr.rel (0) target = $region21
    $region20: #{tpu_custom_call.1} parent=1 // pred_region
      %41 = vsyncadd [#allocation6], 0
      %s42 = sshll.u32 %s4, 4
      %s43 = int_to_ptr.hbm [resolvable:$true] %s42
      %s44 = sshll.u32 [#allocation5], 4
      %s45 = int_to_ptr.vmem [resolvable:$true] %s44
      %50 = dma.hbm_to_vmem [thread:$0]  %s43, 2048, %s45, [#allocation6], 128, 128, 8
    $region21: #{tpu_custom_call.1} parent=1 // pred_fallthru
      _
    // Predicated region
    $region22: #{tpu_custom_call.1} parent=1 // pred_check
      _
    $region23: #{tpu_custom_call.1} parent=1 // pred_check_branch
      %52 = sbr.rel (0) target = $region25
    $region24: #{tpu_custom_call.1} parent=1 // pred_region
      _
    $region25: #{tpu_custom_call.1} parent=1 // pred_fallthru
      _
    // Predicated region
    $region26: #{tpu_custom_call.1} parent=1 // pred_check
      _
    $region27: #{tpu_custom_call.1} parent=1 // pred_check_branch
      %54 = sbr.rel (0) target = $region29
    $region28: #{tpu_custom_call.1} parent=1 // pred_region
      %56 = vsyncadd [#allocation6], 0
      %s57 = sshll.u32 %s6, 4
      %s58 = int_to_ptr.hbm [resolvable:$true] %s57
      %s59 = sshll.u32 [#allocation7], 4
      %s60 = int_to_ptr.vmem [resolvable:$true] %s59
      %65 = dma.hbm_to_vmem [thread:$0]  %s58, 2048, %s60, [#allocation6], 128, 128, 8
    $region29: #{tpu_custom_call.1} parent=1 // pred_fallthru
      _
    // Predicated region
    $region30: #{tpu_custom_call.1} parent=1 // pred_check
      _
    $region31: #{tpu_custom_call.1} parent=1 // pred_check_branch
      %67 = sbr.rel (0) target = $region33
    $region32: #{tpu_custom_call.1} parent=1 // pred_region
      _
    $region33: #{tpu_custom_call.1} parent=1 // pred_fallthru
      _
    // Predicated region
    $region34: #{tpu_custom_call.1} parent=1 // pred_check
      _
    $region35: #{tpu_custom_call.1} parent=1 // pred_check_branch
      %69 = sbr.rel (0) target = $region37
    $region36: #{tpu_custom_call.1} parent=1 // pred_region
      %71 = vsyncadd [#allocation9], 0
      %s72 = sshll.u32 %s8, 4
      %s73 = int_to_ptr.hbm [resolvable:$true] %s72
      %s74 = sshll.u32 [#allocation8], 4
      %s75 = int_to_ptr.vmem [resolvable:$true] %s74
      %80 = dma.hbm_to_vmem [thread:$0]  %s73, 2048, %s75, [#allocation9], 128, 128, 8
    $region37: #{tpu_custom_call.1} parent=1 // pred_fallthru
      _
    // Predicated region
    $region38: #{tpu_custom_call.1} parent=1 // pred_check
      _
    $region39: #{tpu_custom_call.1} parent=1 // pred_check_branch
      %82 = sbr.rel (0) target = $region41
    $region40: #{tpu_custom_call.1} parent=1 // pred_region
      _
    $region41: #{tpu_custom_call.1} parent=1 // pred_fallthru
      _
    // Predicated region
    $region42: #{tpu_custom_call.1} parent=1 // pred_check
      _
    $region43: #{tpu_custom_call.1} parent=1 // pred_check_branch
      %84 = sbr.rel (0) target = $region45
    $region44: #{tpu_custom_call.1} parent=1 // pred_region
      %86 = dma.done [#allocation3], 8192
    $region45: #{tpu_custom_call.1} parent=1 // pred_fallthru
      _
    // Predicated region
    $region46: #{tpu_custom_call.1} parent=1 // pred_check
      _
    $region47: #{tpu_custom_call.1} parent=1 // pred_check_branch
      %88 = sbr.rel (0) target = $region49
    $region48: #{tpu_custom_call.1} parent=1 // pred_region
      %90 = dma.done [#allocation6], 2048
    $region49: #{tpu_custom_call.1} parent=1 // pred_fallthru
      _
    // Predicated region
    $region50: #{tpu_custom_call.1} parent=1 // pred_check
      _
    $region51: #{tpu_custom_call.1} parent=1 // pred_check_branch
      %92 = sbr.rel (0) target = $region53
    $region52: #{tpu_custom_call.1} parent=1 // pred_region
      %94 = dma.done [#allocation6], 2048
    $region53: #{tpu_custom_call.1} parent=1 // pred_fallthru
      _
    // Predicated region
    $region54: #{tpu_custom_call.1} parent=1 // pred_check
      _
    $region55: #{tpu_custom_call.1} parent=1 // pred_check_branch
      %96 = sbr.rel (0) target = $region57
    $region56: #{tpu_custom_call.1} parent=1 // pred_region
      %98 = dma.done [#allocation9], 2048
    $region57: #{tpu_custom_call.1} parent=1 // pred_fallthru
      _
    %v99 = vld [vmem:[%s1] sm:$0xff]
    %v100 = vld [vmem:[%s1 + $0x8] sm:$0xff]
    %v101 = vld [vmem:[#allocation2] sm:$0xff]
    %v102 = vld [vmem:[#allocation2 + $0x8] sm:$0xff]
    %v103 = vld [vmem:[#allocation2 + $0x10] sm:$0xff]
    %v104 = vld [vmem:[#allocation2 + $0x18] sm:$0xff]
    %v105 = vld [vmem:[#allocation2 + $0x20] sm:$0xff]
    %v106 = vld [vmem:[#allocation2 + $0x28] sm:$0xff]
    %v107 = vld [vmem:[#allocation2 + $0x30] sm:$0xff]
    %v108 = vld [vmem:[#allocation2 + $0x38] sm:$0xff]
    %v109 = vld [vmem:[#allocation2 + $0x40] sm:$0xff]
    %v110 = vld [vmem:[#allocation2 + $0x48] sm:$0xff]
    %v111 = vld [vmem:[#allocation2 + $0x50] sm:$0xff]
    %v112 = vld [vmem:[#allocation2 + $0x58] sm:$0xff]
    %v113 = vld [vmem:[#allocation2 + $0x60] sm:$0xff]
    %v114 = vld [vmem:[#allocation2 + $0x68] sm:$0xff]
    %v115 = vld [vmem:[#allocation2 + $0x70] sm:$0xff]
    %v116 = vld [vmem:[#allocation2 + $0x78] sm:$0xff]
    %v117 = vld [vmem:[#allocation2 + $0x80] sm:$0xff]
    %v118 = vld [vmem:[#allocation2 + $0x88] sm:$0xff]
    %v119 = vld [vmem:[#allocation2 + $0x90] sm:$0xff]
    %v120 = vld [vmem:[#allocation2 + $0x98] sm:$0xff]
    %v121 = vld [vmem:[#allocation2 + $0xa0] sm:$0xff]
    %v122 = vld [vmem:[#allocation2 + $0xa8] sm:$0xff]
    %v123 = vld [vmem:[#allocation2 + $0xb0] sm:$0xff]
    %v124 = vld [vmem:[#allocation2 + $0xb8] sm:$0xff]
    %v125 = vld [vmem:[#allocation2 + $0xc0] sm:$0xff]
    %v126 = vld [vmem:[#allocation2 + $0xc8] sm:$0xff]
    %v127 = vld [vmem:[#allocation2 + $0xd0] sm:$0xff]
    %v128 = vld [vmem:[#allocation2 + $0xd8] sm:$0xff]
    %v129 = vld [vmem:[#allocation2 + $0xe0] sm:$0xff]
    %v130 = vld [vmem:[#allocation2 + $0xe8] sm:$0xff]
    %v131 = vld [vmem:[#allocation2 + $0xf0] sm:$0xff]
    %v132 = vld [vmem:[#allocation2 + $0xf8] sm:$0xff]
    %v133 = vld [vmem:[#allocation2 + $0x100] sm:$0xff]
    %v134 = vld [vmem:[#allocation2 + $0x108] sm:$0xff]
    %v135 = vld [vmem:[#allocation2 + $0x110] sm:$0xff]
    %v136 = vld [vmem:[#allocation2 + $0x118] sm:$0xff]
    %v137 = vld [vmem:[#allocation2 + $0x120] sm:$0xff]
    %v138 = vld [vmem:[#allocation2 + $0x128] sm:$0xff]
    %v139 = vld [vmem:[#allocation2 + $0x130] sm:$0xff]
    %v140 = vld [vmem:[#allocation2 + $0x138] sm:$0xff]
    %v141 = vld [vmem:[#allocation2 + $0x140] sm:$0xff]
    %v142 = vld [vmem:[#allocation2 + $0x148] sm:$0xff]
    %v143 = vld [vmem:[#allocation2 + $0x150] sm:$0xff]
    %v144 = vld [vmem:[#allocation2 + $0x158] sm:$0xff]
    %v145 = vld [vmem:[#allocation2 + $0x160] sm:$0xff]
    %v146 = vld [vmem:[#allocation2 + $0x168] sm:$0xff]
    %v147 = vld [vmem:[#allocation2 + $0x170] sm:$0xff]
    %v148 = vld [vmem:[#allocation2 + $0x178] sm:$0xff]
    %v149 = vld [vmem:[#allocation2 + $0x180] sm:$0xff]
    %v150 = vld [vmem:[#allocation2 + $0x188] sm:$0xff]
    %v151 = vld [vmem:[#allocation2 + $0x190] sm:$0xff]
    %v152 = vld [vmem:[#allocation2 + $0x198] sm:$0xff]
    %v153 = vld [vmem:[#allocation2 + $0x1a0] sm:$0xff]
    %v154 = vld [vmem:[#allocation2 + $0x1a8] sm:$0xff]
    %v155 = vld [vmem:[#allocation2 + $0x1b0] sm:$0xff]
    %v156 = vld [vmem:[#allocation2 + $0x1b8] sm:$0xff]
    %v157 = vld [vmem:[#allocation2 + $0x1c0] sm:$0xff]
    %v158 = vld [vmem:[#allocation2 + $0x1c8] sm:$0xff]
    %v159 = vld [vmem:[#allocation2 + $0x1d0] sm:$0xff]
    %v160 = vld [vmem:[#allocation2 + $0x1d8] sm:$0xff]
    %v161 = vld [vmem:[#allocation2 + $0x1e0] sm:$0xff]
    %v162 = vld [vmem:[#allocation2 + $0x1e8] sm:$0xff]
    %v163 = vld [vmem:[#allocation2 + $0x1f0] sm:$0xff]
    %v164 = vld [vmem:[#allocation2 + $0x1f8] sm:$0xff]
    %v165 = vld [vmem:[%s3] sm:$0xf]
    %v166 = vld [vmem:[%s0] sm:$0x3]
    %167 = vmatpush.msra.mxu0 %v161
    %168 = vmatpush.msra.mxu0 %v157
    %169 = vmatpush.msra.mxu0 %v153
    %170 = vmatpush.msra.mxu0 %v149
    %171 = vmatpush.msra.mxu0 %v145
    %172 = vmatpush.msra.mxu0 %v141
    %173 = vmatpush.msra.mxu0 %v137
    %174 = vmatpush.msra.mxu0 %v133
    %175 = vmatpush.msra.mxu0 %v129
    %176 = vmatpush.msra.mxu0 %v125
    %177 = vmatpush.msra.mxu0 %v121
    %178 = vmatpush.msra.mxu0 %v117
    %179 = vmatpush.msra.mxu0 %v113
    %180 = vmatpush.msra.mxu0 %v109
    %181 = vmatpush.msra.mxu0 %v105
    %182 = vmatpush.msra.mxu0 %v101
    %183 = vmatmul.f32.gmra.mxu0 0.0
    %v184 = vpop.f32.mrf.mxu0
    %v185 = vadd.f32 0.0, %v184
    %186 = vdwg.mxu0
    %187 = vmatpush.msra.mxu0 %v162
    %188 = vmatpush.msra.mxu0 %v158
    %189 = vmatpush.msra.mxu0 %v154
    %190 = vmatpush.msra.mxu0 %v150
    %191 = vmatpush.msra.mxu0 %v146
    %192 = vmatpush.msra.mxu0 %v142
    %193 = vmatpush.msra.mxu0 %v138
    %194 = vmatpush.msra.mxu0 %v134
    %195 = vmatpush.msra.mxu0 %v130
    %196 = vmatpush.msra.mxu0 %v126
    %197 = vmatpush.msra.mxu0 %v122
    %198 = vmatpush.msra.mxu0 %v118
    %199 = vmatpush.msra.mxu0 %v114
    %200 = vmatpush.msra.mxu0 %v110
    %201 = vmatpush.msra.mxu0 %v106
    %202 = vmatpush.msra.mxu0 %v102
    %203 = vmatmul.f32.gmra.mxu0 0.0
    %v204 = vpop.f32.mrf.mxu0
    %v205 = vadd.f32 0.0, %v204
    %206 = vdwg.mxu0
    %207 = vmatpush.msra.mxu0 %v163
    %208 = vmatpush.msra.mxu0 %v159
    %209 = vmatpush.msra.mxu0 %v155
    %210 = vmatpush.msra.mxu0 %v151
    %211 = vmatpush.msra.mxu0 %v147
    %212 = vmatpush.msra.mxu0 %v143
    %213 = vmatpush.msra.mxu0 %v139
    %214 = vmatpush.msra.mxu0 %v135
    %215 = vmatpush.msra.mxu0 %v131
    %216 = vmatpush.msra.mxu0 %v127
    %217 = vmatpush.msra.mxu0 %v123
    %218 = vmatpush.msra.mxu0 %v119
    %219 = vmatpush.msra.mxu0 %v115
    %220 = vmatpush.msra.mxu0 %v111
    %221 = vmatpush.msra.mxu0 %v107
    %222 = vmatpush.msra.mxu0 %v103
    %223 = vmatmul.f32.gmra.mxu0 0.0
    %v224 = vpop.f32.mrf.mxu0
    %v225 = vadd.f32 0.0, %v224
    %226 = vdwg.mxu0
    %227 = vmatpush.msra.mxu0 %v164
    %228 = vmatpush.msra.mxu0 %v160
    %229 = vmatpush.msra.mxu0 %v156
    %230 = vmatpush.msra.mxu0 %v152
    %231 = vmatpush.msra.mxu0 %v148
    %232 = vmatpush.msra.mxu0 %v144
    %233 = vmatpush.msra.mxu0 %v140
    %234 = vmatpush.msra.mxu0 %v136
    %235 = vmatpush.msra.mxu0 %v132
    %236 = vmatpush.msra.mxu0 %v128
    %237 = vmatpush.msra.mxu0 %v124
    %238 = vmatpush.msra.mxu0 %v120
    %239 = vmatpush.msra.mxu0 %v116
    %240 = vmatpush.msra.mxu0 %v112
    %241 = vmatpush.msra.mxu0 %v108
    %242 = vmatpush.msra.mxu0 %v104
    %243 = vmatmul.f32.gmra.mxu0 0.0
    %v244 = vpop.f32.mrf.mxu0
    %v245 = vadd.f32 0.0, %v244
    %246 = vdwg.mxu0
    %249 = vst [vmem:[#allocation1] ss:$2 sm:$0xff] %v99
    %s250 = scalar_lea.vmem [#allocation1], 16
    %251 = vst [vmem:[%s250] ss:$2 sm:$0xff] %v100
    %v252 = vld.sshfl [vmem:[#allocation1] sm:$0xff pattern:$0x75316420]
    %v253 = vld.sshfl [vmem:[#allocation1 + $0x8] sm:$0xff pattern:$0x75316420]
    %v254 = vld.sshfl [vmem:[#allocation1 + $0x10] sm:$0xff pattern:$0x75316420]
    %v255 = vld.sshfl [vmem:[#allocation1 + $0x18] sm:$0xff pattern:$0x75316420]
    %vm256 = vcmask 31744
    %v258 = vsel %vm256, %v166, 0
    %vm260 = vcmask 1043456
    %v261 = vsel %vm260, %v252, 0
    %v263 = vsel %vm260, %v253, 0
    %v265 = vsel %vm260, %v254, 0
    %v267 = vsel %vm260, %v255, 0
    %269 = vmatpush.msra.mxu0 0.0
    %270 = vmatpush.msra.mxu0 0.0
    %271 = vmatpush.msra.mxu0 0.0
    %272 = vmatpush.msra.mxu0 0.0
    %273 = vmatpush.msra.mxu0 0.0
    %274 = vmatpush.msra.mxu0 0.0
    %275 = vmatpush.msra.mxu0 0.0
    %276 = vmatpush.msra.mxu0 0.0
    %277 = vmatpush.msra.mxu0 0.0
    %278 = vmatpush.msra.mxu0 0.0
    %279 = vmatpush.msra.mxu0 0.0
    %280 = vmatpush.msra.mxu0 0.0
    %281 = vmatpush.msra.mxu0 0.0
    %282 = vmatpush.msra.mxu0 0.0
    %283 = vmatpush.msra.mxu0 0.0
    %284 = vmatpush.msra.mxu0 %v261
    %285 = vmatmul.f32.gmra.mxu0 %v258
    %v286 = vpop.f32.mrf.mxu0
    %v287 = vadd.f32 %v185, %v286
    %288 = vdwg.mxu0
    %289 = vmatpush.msra.mxu0 0.0
    %290 = vmatpush.msra.mxu0 0.0
    %291 = vmatpush.msra.mxu0 0.0
    %292 = vmatpush.msra.mxu0 0.0
    %293 = vmatpush.msra.mxu0 0.0
    %294 = vmatpush.msra.mxu0 0.0
    %295 = vmatpush.msra.mxu0 0.0
    %296 = vmatpush.msra.mxu0 0.0
    %297 = vmatpush.msra.mxu0 0.0
    %298 = vmatpush.msra.mxu0 0.0
    %299 = vmatpush.msra.mxu0 0.0
    %300 = vmatpush.msra.mxu0 0.0
    %301 = vmatpush.msra.mxu0 0.0
    %302 = vmatpush.msra.mxu0 0.0
    %303 = vmatpush.msra.mxu0 0.0
    %304 = vmatpush.msra.mxu0 %v263
    %305 = vmatmul.f32.gmra.mxu0 %v258
    %v306 = vpop.f32.mrf.mxu0
    %v307 = vadd.f32 %v205, %v306
    %308 = vdwg.mxu0
    %309 = vmatpush.msra.mxu0 0.0
    %310 = vmatpush.msra.mxu0 0.0
    %311 = vmatpush.msra.mxu0 0.0
    %312 = vmatpush.msra.mxu0 0.0
    %313 = vmatpush.msra.mxu0 0.0
    %314 = vmatpush.msra.mxu0 0.0
    %315 = vmatpush.msra.mxu0 0.0
    %316 = vmatpush.msra.mxu0 0.0
    %317 = vmatpush.msra.mxu0 0.0
    %318 = vmatpush.msra.mxu0 0.0
    %319 = vmatpush.msra.mxu0 0.0
    %320 = vmatpush.msra.mxu0 0.0
    %321 = vmatpush.msra.mxu0 0.0
    %322 = vmatpush.msra.mxu0 0.0
    %323 = vmatpush.msra.mxu0 0.0
    %324 = vmatpush.msra.mxu0 %v265
    %325 = vmatmul.f32.gmra.mxu0 %v258
    %v326 = vpop.f32.mrf.mxu0
    %v327 = vadd.f32 %v225, %v326
    %328 = vdwg.mxu0
    %329 = vmatpush.msra.mxu0 0.0
    %330 = vmatpush.msra.mxu0 0.0
    %331 = vmatpush.msra.mxu0 0.0
    %332 = vmatpush.msra.mxu0 0.0
    %333 = vmatpush.msra.mxu0 0.0
    %334 = vmatpush.msra.mxu0 0.0
    %335 = vmatpush.msra.mxu0 0.0
    %336 = vmatpush.msra.mxu0 0.0
    %337 = vmatpush.msra.mxu0 0.0
    %338 = vmatpush.msra.mxu0 0.0
    %339 = vmatpush.msra.mxu0 0.0
    %340 = vmatpush.msra.mxu0 0.0
    %341 = vmatpush.msra.mxu0 0.0
    %342 = vmatpush.msra.mxu0 0.0
    %343 = vmatpush.msra.mxu0 0.0
    %344 = vmatpush.msra.mxu0 %v267
    %345 = vmatmul.f32.gmra.mxu0 %v258
    %v346 = vpop.f32.mrf.mxu0
    %v347 = vadd.f32 %v245, %v346
    %348 = vdwg.mxu0
    %v350 = vperm.slane %v165, 0
    %v351 = vperm.slane %v165, 1
    %v352 = vperm.slane %v165, 2
    %v353 = vperm.slane %v165, 3
    %v358 = vadd.f32 %v287, %v350
    %v359 = vadd.f32 %v307, %v351
    %v360 = vadd.f32 %v327, %v352
    %v361 = vadd.f32 %v347, %v353
    %v362 = vxor.u32 %v358, 2147483648
    %v363 = vmul.f32 %v362, 1.442695
    %v364 = vpow.pop %v363
    %v365 = vadd.f32 %v364, 1.0
    %v366 = vrcp.pop %v365
    %v367 = vmul.f32 %v365, %v366
    %v368 = vsub.f32 1.0, %v367
    %v369 = vmul.f32 %v366, %v368
    %v370 = vadd.f32 %v366, %v369
    %vm371 = vweird.f32 %v365
    %vm372 = vweird.f32 %v366
    %vm373 = vmor %vm371, %vm372
    %v374 = vsel %vm373, %v366, %v370
    %v375 = vand.u32 2147483647, %v365
    %vm376 = vcmp.eq.f32.partialorder %v375, 8.507059e+37
    %v377 = vand.u32 %v365, 2147483648
    %v378 = vor.u32 1.1754944e-38, %v377
    %v379 = vsel %vm376, %v378, %v374
    %v380 = vmul.f32 1.0, %v379
    %v381 = vxor.u32 %v359, 2147483648
    %v382 = vmul.f32 %v381, 1.442695
    %v383 = vpow.pop %v382
    %v384 = vadd.f32 %v383, 1.0
    %v385 = vrcp.pop %v384
    %v386 = vmul.f32 %v384, %v385
    %v387 = vsub.f32 1.0, %v386
    %v388 = vmul.f32 %v385, %v387
    %v389 = vadd.f32 %v385, %v388
    %vm390 = vweird.f32 %v384
    %vm391 = vweird.f32 %v385
    %vm392 = vmor %vm390, %vm391
    %v393 = vsel %vm392, %v385, %v389
    %v394 = vand.u32 2147483647, %v384
    %vm395 = vcmp.eq.f32.partialorder %v394, 8.507059e+37
    %v396 = vand.u32 %v384, 2147483648
    %v397 = vor.u32 1.1754944e-38, %v396
    %v398 = vsel %vm395, %v397, %v393
    %v399 = vmul.f32 1.0, %v398
    %v400 = vtanh.pop %v360
    %v401 = vxor.u32 %v361, 2147483648
    %v402 = vmul.f32 %v401, 1.442695
    %v403 = vpow.pop %v402
    %v404 = vadd.f32 %v403, 1.0
    %v405 = vrcp.pop %v404
    %v406 = vmul.f32 %v404, %v405
    %v407 = vsub.f32 1.0, %v406
    %v408 = vmul.f32 %v405, %v407
    %v409 = vadd.f32 %v405, %v408
    %vm410 = vweird.f32 %v404
    %vm411 = vweird.f32 %v405
    %vm412 = vmor %vm410, %vm411
    %v413 = vsel %vm412, %v405, %v409
    %v414 = vand.u32 2147483647, %v404
    %vm415 = vcmp.eq.f32.partialorder %v414, 8.507059e+37
    %v416 = vand.u32 %v404, 2147483648
    %v417 = vor.u32 1.1754944e-38, %v416
    %v418 = vsel %vm415, %v417, %v413
    %v419 = vmul.f32 1.0, %v418
    %v420 = vmul.f32 %v399, 0.0
    %v421 = vmul.f32 %v380, %v400
    %v422 = vadd.f32 %v420, %v421
    %v423 = vtanh.pop %v422
    %v424 = vmul.f32 %v419, %v423
    %s425 = scalar_lea.vmem %s0, 2
    %v426 = vld [vmem:[%s425] sm:$0x3]
    %427 = vmatpush.msra.mxu0 %v161
    %428 = vmatpush.msra.mxu0 %v157
    %429 = vmatpush.msra.mxu0 %v153
    %430 = vmatpush.msra.mxu0 %v149
    %431 = vmatpush.msra.mxu0 %v145
    %432 = vmatpush.msra.mxu0 %v141
    %433 = vmatpush.msra.mxu0 %v137
    %434 = vmatpush.msra.mxu0 %v133
    %435 = vmatpush.msra.mxu0 %v129
    %436 = vmatpush.msra.mxu0 %v125
    %437 = vmatpush.msra.mxu0 %v121
    %438 = vmatpush.msra.mxu0 %v117
    %439 = vmatpush.msra.mxu0 %v113
    %440 = vmatpush.msra.mxu0 %v109
    %441 = vmatpush.msra.mxu0 %v105
    %442 = vmatpush.msra.mxu0 %v101
    %443 = vmatmul.f32.gmra.mxu0 %v424
    %v444 = vpop.f32.mrf.mxu0
    %v445 = vadd.f32 0.0, %v444
    %446 = vdwg.mxu0
    %447 = vmatpush.msra.mxu0 %v162
    %448 = vmatpush.msra.mxu0 %v158
    %449 = vmatpush.msra.mxu0 %v154
    %450 = vmatpush.msra.mxu0 %v150
    %451 = vmatpush.msra.mxu0 %v146
    %452 = vmatpush.msra.mxu0 %v142
    %453 = vmatpush.msra.mxu0 %v138
    %454 = vmatpush.msra.mxu0 %v134
    %455 = vmatpush.msra.mxu0 %v130
    %456 = vmatpush.msra.mxu0 %v126
    %457 = vmatpush.msra.mxu0 %v122
    %458 = vmatpush.msra.mxu0 %v118
    %459 = vmatpush.msra.mxu0 %v114
    %460 = vmatpush.msra.mxu0 %v110
    %461 = vmatpush.msra.mxu0 %v106
    %462 = vmatpush.msra.mxu0 %v102
    %463 = vmatmul.f32.gmra.mxu0 %v424
    %v464 = vpop.f32.mrf.mxu0
    %v465 = vadd.f32 0.0, %v464
    %466 = vdwg.mxu0
    %467 = vmatpush.msra.mxu0 %v163
    %468 = vmatpush.msra.mxu0 %v159
    %469 = vmatpush.msra.mxu0 %v155
    %470 = vmatpush.msra.mxu0 %v151
    %471 = vmatpush.msra.mxu0 %v147
    %472 = vmatpush.msra.mxu0 %v143
    %473 = vmatpush.msra.mxu0 %v139
    %474 = vmatpush.msra.mxu0 %v135
    %475 = vmatpush.msra.mxu0 %v131
    %476 = vmatpush.msra.mxu0 %v127
    %477 = vmatpush.msra.mxu0 %v123
    %478 = vmatpush.msra.mxu0 %v119
    %479 = vmatpush.msra.mxu0 %v115
    %480 = vmatpush.msra.mxu0 %v111
    %481 = vmatpush.msra.mxu0 %v107
    %482 = vmatpush.msra.mxu0 %v103
    %483 = vmatmul.f32.gmra.mxu0 %v424
    %v484 = vpop.f32.mrf.mxu0
    %v485 = vadd.f32 0.0, %v484
    %486 = vdwg.mxu0
    %487 = vmatpush.msra.mxu0 %v164
    %488 = vmatpush.msra.mxu0 %v160
    %489 = vmatpush.msra.mxu0 %v156
    %490 = vmatpush.msra.mxu0 %v152
    %491 = vmatpush.msra.mxu0 %v148
    %492 = vmatpush.msra.mxu0 %v144
    %493 = vmatpush.msra.mxu0 %v140
    %494 = vmatpush.msra.mxu0 %v136
    %495 = vmatpush.msra.mxu0 %v132
    %496 = vmatpush.msra.mxu0 %v128
    %497 = vmatpush.msra.mxu0 %v124
    %498 = vmatpush.msra.mxu0 %v120
    %499 = vmatpush.msra.mxu0 %v116
    %500 = vmatpush.msra.mxu0 %v112
    %501 = vmatpush.msra.mxu0 %v108
    %502 = vmatpush.msra.mxu0 %v104
    %503 = vmatmul.f32.gmra.mxu0 %v424
    %v504 = vpop.f32.mrf.mxu0
    %v505 = vadd.f32 0.0, %v504
    %506 = vdwg.mxu0
    %507 = vst [vmem:[#allocation1] ss:$2 sm:$0xff] %v99
    %s508 = scalar_lea.vmem [#allocation1], 16
    %509 = vst [vmem:[%s508] ss:$2 sm:$0xff] %v100
    %v510 = vld.sshfl [vmem:[#allocation1] sm:$0xff pattern:$0x75316420]
    %v511 = vld.sshfl [vmem:[#allocation1 + $0x8] sm:$0xff pattern:$0x75316420]
    %v512 = vld.sshfl [vmem:[#allocation1 + $0x10] sm:$0xff pattern:$0x75316420]
    %v513 = vld.sshfl [vmem:[#allocation1 + $0x18] sm:$0xff pattern:$0x75316420]
    %v515 = vsel %vm256, %v426, 0
    %v517 = vsel %vm260, %v510, 0
    %v519 = vsel %vm260, %v511, 0
    %v521 = vsel %vm260, %v512, 0
    %v523 = vsel %vm260, %v513, 0
    %525 = vmatpush.msra.mxu0 0.0
    %526 = vmatpush.msra.mxu0 0.0
    %527 = vmatpush.msra.mxu0 0.0
    %528 = vmatpush.msra.mxu0 0.0
    %529 = vmatpush.msra.mxu0 0.0
    %530 = vmatpush.msra.mxu0 0.0
    %531 = vmatpush.msra.mxu0 0.0
    %532 = vmatpush.msra.mxu0 0.0
    %533 = vmatpush.msra.mxu0 0.0
    %534 = vmatpush.msra.mxu0 0.0
    %535 = vmatpush.msra.mxu0 0.0
    %536 = vmatpush.msra.mxu0 0.0
    %537 = vmatpush.msra.mxu0 0.0
    %538 = vmatpush.msra.mxu0 0.0
    %539 = vmatpush.msra.mxu0 0.0
    %540 = vmatpush.msra.mxu0 %v517
    %541 = vmatmul.f32.gmra.mxu0 %v515
    %v542 = vpop.f32.mrf.mxu0
    %v543 = vadd.f32 %v445, %v542
    %544 = vdwg.mxu0
    %545 = vmatpush.msra.mxu0 0.0
    %546 = vmatpush.msra.mxu0 0.0
    %547 = vmatpush.msra.mxu0 0.0
    %548 = vmatpush.msra.mxu0 0.0
    %549 = vmatpush.msra.mxu0 0.0
    %550 = vmatpush.msra.mxu0 0.0
    %551 = vmatpush.msra.mxu0 0.0
    %552 = vmatpush.msra.mxu0 0.0
    %553 = vmatpush.msra.mxu0 0.0
    %554 = vmatpush.msra.mxu0 0.0
    %555 = vmatpush.msra.mxu0 0.0
    %556 = vmatpush.msra.mxu0 0.0
    %557 = vmatpush.msra.mxu0 0.0
    %558 = vmatpush.msra.mxu0 0.0
    %559 = vmatpush.msra.mxu0 0.0
    %560 = vmatpush.msra.mxu0 %v519
    %561 = vmatmul.f32.gmra.mxu0 %v515
    %v562 = vpop.f32.mrf.mxu0
    %v563 = vadd.f32 %v465, %v562
    %564 = vdwg.mxu0
    %565 = vmatpush.msra.mxu0 0.0
    %566 = vmatpush.msra.mxu0 0.0
    %567 = vmatpush.msra.mxu0 0.0
    %568 = vmatpush.msra.mxu0 0.0
    %569 = vmatpush.msra.mxu0 0.0
    %570 = vmatpush.msra.mxu0 0.0
    %571 = vmatpush.msra.mxu0 0.0
    %572 = vmatpush.msra.mxu0 0.0
    %573 = vmatpush.msra.mxu0 0.0
    %574 = vmatpush.msra.mxu0 0.0
    %575 = vmatpush.msra.mxu0 0.0
    %576 = vmatpush.msra.mxu0 0.0
    %577 = vmatpush.msra.mxu0 0.0
    %578 = vmatpush.msra.mxu0 0.0
    %579 = vmatpush.msra.mxu0 0.0
    %580 = vmatpush.msra.mxu0 %v521
    %581 = vmatmul.f32.gmra.mxu0 %v515
    %v582 = vpop.f32.mrf.mxu0
    %v583 = vadd.f32 %v485, %v582
    %584 = vdwg.mxu0
    %585 = vmatpush.msra.mxu0 0.0
    %586 = vmatpush.msra.mxu0 0.0
    %587 = vmatpush.msra.mxu0 0.0
    %588 = vmatpush.msra.mxu0 0.0
    %589 = vmatpush.msra.mxu0 0.0
    %590 = vmatpush.msra.mxu0 0.0
    %591 = vmatpush.msra.mxu0 0.0
    %592 = vmatpush.msra.mxu0 0.0
    %593 = vmatpush.msra.mxu0 0.0
    %594 = vmatpush.msra.mxu0 0.0
    %595 = vmatpush.msra.mxu0 0.0
    %596 = vmatpush.msra.mxu0 0.0
    %597 = vmatpush.msra.mxu0 0.0
    %598 = vmatpush.msra.mxu0 0.0
    %599 = vmatpush.msra.mxu0 0.0
    %600 = vmatpush.msra.mxu0 %v523
    %601 = vmatmul.f32.gmra.mxu0 %v515
    %v602 = vpop.f32.mrf.mxu0
    %v603 = vadd.f32 %v505, %v602
    %604 = vdwg.mxu0
    %v605 = vadd.f32 %v543, %v350
    %v606 = vadd.f32 %v563, %v351
    %v607 = vadd.f32 %v583, %v352
    %v608 = vadd.f32 %v603, %v353
    %v609 = vxor.u32 %v605, 2147483648
    %v610 = vmul.f32 %v609, 1.442695
    %v611 = vpow.pop %v610
    %v612 = vadd.f32 %v611, 1.0
    %v613 = vrcp.pop %v612
    %v614 = vmul.f32 %v612, %v613
    %v615 = vsub.f32 1.0, %v614
    %v616 = vmul.f32 %v613, %v615
    %v617 = vadd.f32 %v613, %v616
    %vm618 = vweird.f32 %v612
    %vm619 = vweird.f32 %v613
    %vm620 = vmor %vm618, %vm619
    %v621 = vsel %vm620, %v613, %v617
    %v622 = vand.u32 2147483647, %v612
    %vm623 = vcmp.eq.f32.partialorder %v622, 8.507059e+37
    %v624 = vand.u32 %v612, 2147483648
    %v625 = vor.u32 1.1754944e-38, %v624
    %v626 = vsel %vm623, %v625, %v621
    %v627 = vmul.f32 1.0, %v626
    %v628 = vxor.u32 %v606, 2147483648
    %v629 = vmul.f32 %v628, 1.442695
    %v630 = vpow.pop %v629
    %v631 = vadd.f32 %v630, 1.0
    %v632 = vrcp.pop %v631
    %v633 = vmul.f32 %v631, %v632
    %v634 = vsub.f32 1.0, %v633
    %v635 = vmul.f32 %v632, %v634
    %v636 = vadd.f32 %v632, %v635
    %vm637 = vweird.f32 %v631
    %vm638 = vweird.f32 %v632
    %vm639 = vmor %vm637, %vm638
    %v640 = vsel %vm639, %v632, %v636
    %v641 = vand.u32 2147483647, %v631
    %vm642 = vcmp.eq.f32.partialorder %v641, 8.507059e+37
    %v643 = vand.u32 %v631, 2147483648
    %v644 = vor.u32 1.1754944e-38, %v643
    %v645 = vsel %vm642, %v644, %v640
    %v646 = vmul.f32 1.0, %v645
    %v647 = vtanh.pop %v607
    %v648 = vxor.u32 %v608, 2147483648
    %v649 = vmul.f32 %v648, 1.442695
    %v650 = vpow.pop %v649
    %v651 = vadd.f32 %v650, 1.0
    %v652 = vrcp.pop %v651
    %v653 = vmul.f32 %v651, %v652
    %v654 = vsub.f32 1.0, %v653
    %v655 = vmul.f32 %v652, %v654
    %v656 = vadd.f32 %v652, %v655
    %vm657 = vweird.f32 %v651
    %vm658 = vweird.f32 %v652
    %vm659 = vmor %vm657, %vm658
    %v660 = vsel %vm659, %v652, %v656
    %v661 = vand.u32 2147483647, %v651
    %vm662 = vcmp.eq.f32.partialorder %v661, 8.507059e+37
    %v663 = vand.u32 %v651, 2147483648
    %v664 = vor.u32 1.1754944e-38, %v663
    %v665 = vsel %vm662, %v664, %v660
    %v666 = vmul.f32 1.0, %v665
    %v667 = vmul.f32 %v646, %v422
    %v668 = vmul.f32 %v627, %v647
    %v669 = vadd.f32 %v667, %v668
    %v670 = vtanh.pop %v669
    %v671 = vmul.f32 %v666, %v670
    %s672 = scalar_lea.vmem %s0, 4
    %v673 = vld [vmem:[%s672] sm:$0x3]
    %674 = vmatpush.msra.mxu0 %v161
    %675 = vmatpush.msra.mxu0 %v157
    %676 = vmatpush.msra.mxu0 %v153
    %677 = vmatpush.msra.mxu0 %v149
    %678 = vmatpush.msra.mxu0 %v145
    %679 = vmatpush.msra.mxu0 %v141
    %680 = vmatpush.msra.mxu0 %v137
    %681 = vmatpush.msra.mxu0 %v133
    %682 = vmatpush.msra.mxu0 %v129
    %683 = vmatpush.msra.mxu0 %v125
    %684 = vmatpush.msra.mxu0 %v121
    %685 = vmatpush.msra.mxu0 %v117
    %686 = vmatpush.msra.mxu0 %v113
    %687 = vmatpush.msra.mxu0 %v109
    %688 = vmatpush.msra.mxu0 %v105
    %689 = vmatpush.msra.mxu0 %v101
    %690 = vmatmul.f32.gmra.mxu0 %v671
    %v691 = vpop.f32.mrf.mxu0
    %v692 = vadd.f32 0.0, %v691
    %693 = vdwg.mxu0
    %694 = vmatpush.msra.mxu0 %v162
    %695 = vmatpush.msra.mxu0 %v158
    %696 = vmatpush.msra.mxu0 %v154
    %697 = vmatpush.msra.mxu0 %v150
    %698 = vmatpush.msra.mxu0 %v146
    %699 = vmatpush.msra.mxu0 %v142
    %700 = vmatpush.msra.mxu0 %v138
    %701 = vmatpush.msra.mxu0 %v134
    %702 = vmatpush.msra.mxu0 %v130
    %703 = vmatpush.msra.mxu0 %v126
    %704 = vmatpush.msra.mxu0 %v122
    %705 = vmatpush.msra.mxu0 %v118
    %706 = vmatpush.msra.mxu0 %v114
    %707 = vmatpush.msra.mxu0 %v110
    %708 = vmatpush.msra.mxu0 %v106
    %709 = vmatpush.msra.mxu0 %v102
    %710 = vmatmul.f32.gmra.mxu0 %v671
    %v711 = vpop.f32.mrf.mxu0
    %v712 = vadd.f32 0.0, %v711
    %713 = vdwg.mxu0
    %714 = vmatpush.msra.mxu0 %v163
    %715 = vmatpush.msra.mxu0 %v159
    %716 = vmatpush.msra.mxu0 %v155
    %717 = vmatpush.msra.mxu0 %v151
    %718 = vmatpush.msra.mxu0 %v147
    %719 = vmatpush.msra.mxu0 %v143
    %720 = vmatpush.msra.mxu0 %v139
    %721 = vmatpush.msra.mxu0 %v135
    %722 = vmatpush.msra.mxu0 %v131
    %723 = vmatpush.msra.mxu0 %v127
    %724 = vmatpush.msra.mxu0 %v123
    %725 = vmatpush.msra.mxu0 %v119
    %726 = vmatpush.msra.mxu0 %v115
    %727 = vmatpush.msra.mxu0 %v111
    %728 = vmatpush.msra.mxu0 %v107
    %729 = vmatpush.msra.mxu0 %v103
    %730 = vmatmul.f32.gmra.mxu0 %v671
    %v731 = vpop.f32.mrf.mxu0
    %v732 = vadd.f32 0.0, %v731
    %733 = vdwg.mxu0
    %734 = vmatpush.msra.mxu0 %v164
    %735 = vmatpush.msra.mxu0 %v160
    %736 = vmatpush.msra.mxu0 %v156
    %737 = vmatpush.msra.mxu0 %v152
    %738 = vmatpush.msra.mxu0 %v148
    %739 = vmatpush.msra.mxu0 %v144
    %740 = vmatpush.msra.mxu0 %v140
    %741 = vmatpush.msra.mxu0 %v136
    %742 = vmatpush.msra.mxu0 %v132
    %743 = vmatpush.msra.mxu0 %v128
    %744 = vmatpush.msra.mxu0 %v124
    %745 = vmatpush.msra.mxu0 %v120
    %746 = vmatpush.msra.mxu0 %v116
    %747 = vmatpush.msra.mxu0 %v112
    %748 = vmatpush.msra.mxu0 %v108
    %749 = vmatpush.msra.mxu0 %v104
    %750 = vmatmul.f32.gmra.mxu0 %v671
    %v751 = vpop.f32.mrf.mxu0
    %v752 = vadd.f32 0.0, %v751
    %753 = vdwg.mxu0
    %754 = vst [vmem:[#allocation1] ss:$2 sm:$0xff] %v99
    %s755 = scalar_lea.vmem [#allocation1], 16
    %756 = vst [vmem:[%s755] ss:$2 sm:$0xff] %v100
    %v757 = vld.sshfl [vmem:[#allocation1] sm:$0xff pattern:$0x75316420]
    %v758 = vld.sshfl [vmem:[#allocation1 + $0x8] sm:$0xff pattern:$0x75316420]
    %v759 = vld.sshfl [vmem:[#allocation1 + $0x10] sm:$0xff pattern:$0x75316420]
    %v760 = vld.sshfl [vmem:[#allocation1 + $0x18] sm:$0xff pattern:$0x75316420]
    %v762 = vsel %vm256, %v673, 0
    %v764 = vsel %vm260, %v757, 0
    %v766 = vsel %vm260, %v758, 0
    %v768 = vsel %vm260, %v759, 0
    %v770 = vsel %vm260, %v760, 0
    %772 = vmatpush.msra.mxu0 0.0
    %773 = vmatpush.msra.mxu0 0.0
    %774 = vmatpush.msra.mxu0 0.0
    %775 = vmatpush.msra.mxu0 0.0
    %776 = vmatpush.msra.mxu0 0.0
    %777 = vmatpush.msra.mxu0 0.0
    %778 = vmatpush.msra.mxu0 0.0
    %779 = vmatpush.msra.mxu0 0.0
    %780 = vmatpush.msra.mxu0 0.0
    %781 = vmatpush.msra.mxu0 0.0
    %782 = vmatpush.msra.mxu0 0.0
    %783 = vmatpush.msra.mxu0 0.0
    %784 = vmatpush.msra.mxu0 0.0
    %785 = vmatpush.msra.mxu0 0.0
    %786 = vmatpush.msra.mxu0 0.0
    %787 = vmatpush.msra.mxu0 %v764
    %788 = vmatmul.f32.gmra.mxu0 %v762
    %v789 = vpop.f32.mrf.mxu0
    %v790 = vadd.f32 %v692, %v789
    %791 = vdwg.mxu0
    %792 = vmatpush.msra.mxu0 0.0
    %793 = vmatpush.msra.mxu0 0.0
    %794 = vmatpush.msra.mxu0 0.0
    %795 = vmatpush.msra.mxu0 0.0
    %796 = vmatpush.msra.mxu0 0.0
    %797 = vmatpush.msra.mxu0 0.0
    %798 = vmatpush.msra.mxu0 0.0
    %799 = vmatpush.msra.mxu0 0.0
    %800 = vmatpush.msra.mxu0 0.0
    %801 = vmatpush.msra.mxu0 0.0
    %802 = vmatpush.msra.mxu0 0.0
    %803 = vmatpush.msra.mxu0 0.0
    %804 = vmatpush.msra.mxu0 0.0
    %805 = vmatpush.msra.mxu0 0.0
    %806 = vmatpush.msra.mxu0 0.0
    %807 = vmatpush.msra.mxu0 %v766
    %808 = vmatmul.f32.gmra.mxu0 %v762
    %v809 = vpop.f32.mrf.mxu0
    %v810 = vadd.f32 %v712, %v809
    %811 = vdwg.mxu0
    %812 = vmatpush.msra.mxu0 0.0
    %813 = vmatpush.msra.mxu0 0.0
    %814 = vmatpush.msra.mxu0 0.0
    %815 = vmatpush.msra.mxu0 0.0
    %816 = vmatpush.msra.mxu0 0.0
    %817 = vmatpush.msra.mxu0 0.0
    %818 = vmatpush.msra.mxu0 0.0
    %819 = vmatpush.msra.mxu0 0.0
    %820 = vmatpush.msra.mxu0 0.0
    %821 = vmatpush.msra.mxu0 0.0
    %822 = vmatpush.msra.mxu0 0.0
    %823 = vmatpush.msra.mxu0 0.0
    %824 = vmatpush.msra.mxu0 0.0
    %825 = vmatpush.msra.mxu0 0.0
    %826 = vmatpush.msra.mxu0 0.0
    %827 = vmatpush.msra.mxu0 %v768
    %828 = vmatmul.f32.gmra.mxu0 %v762
    %v829 = vpop.f32.mrf.mxu0
    %v830 = vadd.f32 %v732, %v829
    %831 = vdwg.mxu0
    %832 = vmatpush.msra.mxu0 0.0
    %833 = vmatpush.msra.mxu0 0.0
    %834 = vmatpush.msra.mxu0 0.0
    %835 = vmatpush.msra.mxu0 0.0
    %836 = vmatpush.msra.mxu0 0.0
    %837 = vmatpush.msra.mxu0 0.0
    %838 = vmatpush.msra.mxu0 0.0
    %839 = vmatpush.msra.mxu0 0.0
    %840 = vmatpush.msra.mxu0 0.0
    %841 = vmatpush.msra.mxu0 0.0
    %842 = vmatpush.msra.mxu0 0.0
    %843 = vmatpush.msra.mxu0 0.0
    %844 = vmatpush.msra.mxu0 0.0
    %845 = vmatpush.msra.mxu0 0.0
    %846 = vmatpush.msra.mxu0 0.0
    %847 = vmatpush.msra.mxu0 %v770
    %848 = vmatmul.f32.gmra.mxu0 %v762
    %v849 = vpop.f32.mrf.mxu0
    %v850 = vadd.f32 %v752, %v849
    %851 = vdwg.mxu0
    %v852 = vadd.f32 %v790, %v350
    %v853 = vadd.f32 %v810, %v351
    %v854 = vadd.f32 %v830, %v352
    %v855 = vadd.f32 %v850, %v353
    %v856 = vxor.u32 %v852, 2147483648
    %v857 = vmul.f32 %v856, 1.442695
    %v858 = vpow.pop %v857
    %v859 = vadd.f32 %v858, 1.0
    %v860 = vrcp.pop %v859
    %v861 = vmul.f32 %v859, %v860
    %v862 = vsub.f32 1.0, %v861
    %v863 = vmul.f32 %v860, %v862
    %v864 = vadd.f32 %v860, %v863
    %vm865 = vweird.f32 %v859
    %vm866 = vweird.f32 %v860
    %vm867 = vmor %vm865, %vm866
    %v868 = vsel %vm867, %v860, %v864
    %v869 = vand.u32 2147483647, %v859
    %vm870 = vcmp.eq.f32.partialorder %v869, 8.507059e+37
    %v871 = vand.u32 %v859, 2147483648
    %v872 = vor.u32 1.1754944e-38, %v871
    %v873 = vsel %vm870, %v872, %v868
    %v874 = vmul.f32 1.0, %v873
    %v875 = vxor.u32 %v853, 2147483648
    %v876 = vmul.f32 %v875, 1.442695
    %v877 = vpow.pop %v876
    %v878 = vadd.f32 %v877, 1.0
    %v879 = vrcp.pop %v878
    %v880 = vmul.f32 %v878, %v879
    %v881 = vsub.f32 1.0, %v880
    %v882 = vmul.f32 %v879, %v881
    %v883 = vadd.f32 %v879, %v882
    %vm884 = vweird.f32 %v878
    %vm885 = vweird.f32 %v879
    %vm886 = vmor %vm884, %vm885
    %v887 = vsel %vm886, %v879, %v883
    %v888 = vand.u32 2147483647, %v878
    %vm889 = vcmp.eq.f32.partialorder %v888, 8.507059e+37
    %v890 = vand.u32 %v878, 2147483648
    %v891 = vor.u32 1.1754944e-38, %v890
    %v892 = vsel %vm889, %v891, %v887
    %v893 = vmul.f32 1.0, %v892
    %v894 = vtanh.pop %v854
    %v895 = vxor.u32 %v855, 2147483648
    %v896 = vmul.f32 %v895, 1.442695
    %v897 = vpow.pop %v896
    %v898 = vadd.f32 %v897, 1.0
    %v899 = vrcp.pop %v898
    %v900 = vmul.f32 %v898, %v899
    %v901 = vsub.f32 1.0, %v900
    %v902 = vmul.f32 %v899, %v901
    %v903 = vadd.f32 %v899, %v902
    %vm904 = vweird.f32 %v898
    %vm905 = vweird.f32 %v899
    %vm906 = vmor %vm904, %vm905
    %v907 = vsel %vm906, %v899, %v903
    %v908 = vand.u32 2147483647, %v898
    %vm909 = vcmp.eq.f32.partialorder %v908, 8.507059e+37
    %v910 = vand.u32 %v898, 2147483648
    %v911 = vor.u32 1.1754944e-38, %v910
    %v912 = vsel %vm909, %v911, %v907
    %v913 = vmul.f32 1.0, %v912
    %v914 = vmul.f32 %v893, %v669
    %v915 = vmul.f32 %v874, %v894
    %v916 = vadd.f32 %v914, %v915
    %v917 = vtanh.pop %v916
    %v918 = vmul.f32 %v913, %v917
    %s919 = scalar_lea.vmem %s0, 6
    %v920 = vld [vmem:[%s919] sm:$0x3]
    %921 = vmatpush.msra.mxu0 %v161
    %922 = vmatpush.msra.mxu0 %v157
    %923 = vmatpush.msra.mxu0 %v153
    %924 = vmatpush.msra.mxu0 %v149
    %925 = vmatpush.msra.mxu0 %v145
    %926 = vmatpush.msra.mxu0 %v141
    %927 = vmatpush.msra.mxu0 %v137
    %928 = vmatpush.msra.mxu0 %v133
    %929 = vmatpush.msra.mxu0 %v129
    %930 = vmatpush.msra.mxu0 %v125
    %931 = vmatpush.msra.mxu0 %v121
    %932 = vmatpush.msra.mxu0 %v117
    %933 = vmatpush.msra.mxu0 %v113
    %934 = vmatpush.msra.mxu0 %v109
    %935 = vmatpush.msra.mxu0 %v105
    %936 = vmatpush.msra.mxu0 %v101
    %937 = vmatmul.f32.gmra.mxu0 %v918
    %v938 = vpop.f32.mrf.mxu0
    %v939 = vadd.f32 0.0, %v938
    %940 = vdwg.mxu0
    %941 = vmatpush.msra.mxu0 %v162
    %942 = vmatpush.msra.mxu0 %v158
    %943 = vmatpush.msra.mxu0 %v154
    %944 = vmatpush.msra.mxu0 %v150
    %945 = vmatpush.msra.mxu0 %v146
    %946 = vmatpush.msra.mxu0 %v142
    %947 = vmatpush.msra.mxu0 %v138
    %948 = vmatpush.msra.mxu0 %v134
    %949 = vmatpush.msra.mxu0 %v130
    %950 = vmatpush.msra.mxu0 %v126
    %951 = vmatpush.msra.mxu0 %v122
    %952 = vmatpush.msra.mxu0 %v118
    %953 = vmatpush.msra.mxu0 %v114
    %954 = vmatpush.msra.mxu0 %v110
    %955 = vmatpush.msra.mxu0 %v106
    %956 = vmatpush.msra.mxu0 %v102
    %957 = vmatmul.f32.gmra.mxu0 %v918
    %v958 = vpop.f32.mrf.mxu0
    %v959 = vadd.f32 0.0, %v958
    %960 = vdwg.mxu0
    %961 = vmatpush.msra.mxu0 %v163
    %962 = vmatpush.msra.mxu0 %v159
    %963 = vmatpush.msra.mxu0 %v155
    %964 = vmatpush.msra.mxu0 %v151
    %965 = vmatpush.msra.mxu0 %v147
    %966 = vmatpush.msra.mxu0 %v143
    %967 = vmatpush.msra.mxu0 %v139
    %968 = vmatpush.msra.mxu0 %v135
    %969 = vmatpush.msra.mxu0 %v131
    %970 = vmatpush.msra.mxu0 %v127
    %971 = vmatpush.msra.mxu0 %v123
    %972 = vmatpush.msra.mxu0 %v119
    %973 = vmatpush.msra.mxu0 %v115
    %974 = vmatpush.msra.mxu0 %v111
    %975 = vmatpush.msra.mxu0 %v107
    %976 = vmatpush.msra.mxu0 %v103
    %977 = vmatmul.f32.gmra.mxu0 %v918
    %v978 = vpop.f32.mrf.mxu0
    %v979 = vadd.f32 0.0, %v978
    %980 = vdwg.mxu0
    %981 = vmatpush.msra.mxu0 %v164
    %982 = vmatpush.msra.mxu0 %v160
    %983 = vmatpush.msra.mxu0 %v156
    %984 = vmatpush.msra.mxu0 %v152
    %985 = vmatpush.msra.mxu0 %v148
    %986 = vmatpush.msra.mxu0 %v144
    %987 = vmatpush.msra.mxu0 %v140
    %988 = vmatpush.msra.mxu0 %v136
    %989 = vmatpush.msra.mxu0 %v132
    %990 = vmatpush.msra.mxu0 %v128
    %991 = vmatpush.msra.mxu0 %v124
    %992 = vmatpush.msra.mxu0 %v120
    %993 = vmatpush.msra.mxu0 %v116
    %994 = vmatpush.msra.mxu0 %v112
    %995 = vmatpush.msra.mxu0 %v108
    %996 = vmatpush.msra.mxu0 %v104
    %997 = vmatmul.f32.gmra.mxu0 %v918
    %v998 = vpop.f32.mrf.mxu0
    %v999 = vadd.f32 0.0, %v998
    %1000 = vdwg.mxu0
    %1001 = vst [vmem:[#allocation1] ss:$2 sm:$0xff] %v99
    %s1002 = scalar_lea.vmem [#allocation1], 16
    %1003 = vst [vmem:[%s1002] ss:$2 sm:$0xff] %v100
    %v1004 = vld.sshfl [vmem:[#allocation1] sm:$0xff pattern:$0x75316420]
    %v1005 = vld.sshfl [vmem:[#allocation1 + $0x8] sm:$0xff pattern:$0x75316420]
    %v1006 = vld.sshfl [vmem:[#allocation1 + $0x10] sm:$0xff pattern:$0x75316420]
    %v1007 = vld.sshfl [vmem:[#allocation1 + $0x18] sm:$0xff pattern:$0x75316420]
    %v1009 = vsel %vm256, %v920, 0
    %v1011 = vsel %vm260, %v1004, 0
    %v1013 = vsel %vm260, %v1005, 0
    %v1015 = vsel %vm260, %v1006, 0
    %v1017 = vsel %vm260, %v1007, 0
    %1019 = vmatpush.msra.mxu0 0.0
    %1020 = vmatpush.msra.mxu0 0.0
    %1021 = vmatpush.msra.mxu0 0.0
    %1022 = vmatpush.msra.mxu0 0.0
    %1023 = vmatpush.msra.mxu0 0.0
    %1024 = vmatpush.msra.mxu0 0.0
    %1025 = vmatpush.msra.mxu0 0.0
    %1026 = vmatpush.msra.mxu0 0.0
    %1027 = vmatpush.msra.mxu0 0.0
    %1028 = vmatpush.msra.mxu0 0.0
    %1029 = vmatpush.msra.mxu0 0.0
    %1030 = vmatpush.msra.mxu0 0.0
    %1031 = vmatpush.msra.mxu0 0.0
    %1032 = vmatpush.msra.mxu0 0.0
    %1033 = vmatpush.msra.mxu0 0.0
    %1034 = vmatpush.msra.mxu0 %v1011
    %1035 = vmatmul.f32.gmra.mxu0 %v1009
    %v1036 = vpop.f32.mrf.mxu0
    %v1037 = vadd.f32 %v939, %v1036
    %1038 = vdwg.mxu0
    %1039 = vmatpush.msra.mxu0 0.0
    %1040 = vmatpush.msra.mxu0 0.0
    %1041 = vmatpush.msra.mxu0 0.0
    %1042 = vmatpush.msra.mxu0 0.0
    %1043 = vmatpush.msra.mxu0 0.0
    %1044 = vmatpush.msra.mxu0 0.0
    %1045 = vmatpush.msra.mxu0 0.0
    %1046 = vmatpush.msra.mxu0 0.0
    %1047 = vmatpush.msra.mxu0 0.0
    %1048 = vmatpush.msra.mxu0 0.0
    %1049 = vmatpush.msra.mxu0 0.0
    %1050 = vmatpush.msra.mxu0 0.0
    %1051 = vmatpush.msra.mxu0 0.0
    %1052 = vmatpush.msra.mxu0 0.0
    %1053 = vmatpush.msra.mxu0 0.0
    %1054 = vmatpush.msra.mxu0 %v1013
    %1055 = vmatmul.f32.gmra.mxu0 %v1009
    %v1056 = vpop.f32.mrf.mxu0
    %v1057 = vadd.f32 %v959, %v1056
    %1058 = vdwg.mxu0
    %1059 = vmatpush.msra.mxu0 0.0
    %1060 = vmatpush.msra.mxu0 0.0
    %1061 = vmatpush.msra.mxu0 0.0
    %1062 = vmatpush.msra.mxu0 0.0
    %1063 = vmatpush.msra.mxu0 0.0
    %1064 = vmatpush.msra.mxu0 0.0
    %1065 = vmatpush.msra.mxu0 0.0
    %1066 = vmatpush.msra.mxu0 0.0
    %1067 = vmatpush.msra.mxu0 0.0
    %1068 = vmatpush.msra.mxu0 0.0
    %1069 = vmatpush.msra.mxu0 0.0
    %1070 = vmatpush.msra.mxu0 0.0
    %1071 = vmatpush.msra.mxu0 0.0
    %1072 = vmatpush.msra.mxu0 0.0
    %1073 = vmatpush.msra.mxu0 0.0
    %1074 = vmatpush.msra.mxu0 %v1015
    %1075 = vmatmul.f32.gmra.mxu0 %v1009
    %v1076 = vpop.f32.mrf.mxu0
    %v1077 = vadd.f32 %v979, %v1076
    %1078 = vdwg.mxu0
    %1079 = vmatpush.msra.mxu0 0.0
    %1080 = vmatpush.msra.mxu0 0.0
    %1081 = vmatpush.msra.mxu0 0.0
    %1082 = vmatpush.msra.mxu0 0.0
    %1083 = vmatpush.msra.mxu0 0.0
    %1084 = vmatpush.msra.mxu0 0.0
    %1085 = vmatpush.msra.mxu0 0.0
    %1086 = vmatpush.msra.mxu0 0.0
    %1087 = vmatpush.msra.mxu0 0.0
    %1088 = vmatpush.msra.mxu0 0.0
    %1089 = vmatpush.msra.mxu0 0.0
    %1090 = vmatpush.msra.mxu0 0.0
    %1091 = vmatpush.msra.mxu0 0.0
    %1092 = vmatpush.msra.mxu0 0.0
    %1093 = vmatpush.msra.mxu0 0.0
    %1094 = vmatpush.msra.mxu0 %v1017
    %1095 = vmatmul.f32.gmra.mxu0 %v1009
    %v1096 = vpop.f32.mrf.mxu0
    %v1097 = vadd.f32 %v999, %v1096
    %1098 = vdwg.mxu0
    %v1099 = vadd.f32 %v1037, %v350
    %v1100 = vadd.f32 %v1057, %v351
    %v1101 = vadd.f32 %v1077, %v352
    %v1102 = vadd.f32 %v1097, %v353
    %v1103 = vxor.u32 %v1099, 2147483648
    %v1104 = vmul.f32 %v1103, 1.442695
    %v1105 = vpow.pop %v1104
    %v1106 = vadd.f32 %v1105, 1.0
    %v1107 = vrcp.pop %v1106
    %v1108 = vmul.f32 %v1106, %v1107
    %v1109 = vsub.f32 1.0, %v1108
    %v1110 = vmul.f32 %v1107, %v1109
    %v1111 = vadd.f32 %v1107, %v1110
    %vm1112 = vweird.f32 %v1106
    %vm1113 = vweird.f32 %v1107
    %vm1114 = vmor %vm1112, %vm1113
    %v1115 = vsel %vm1114, %v1107, %v1111
    %v1116 = vand.u32 2147483647, %v1106
    %vm1117 = vcmp.eq.f32.partialorder %v1116, 8.507059e+37
    %v1118 = vand.u32 %v1106, 2147483648
    %v1119 = vor.u32 1.1754944e-38, %v1118
    %v1120 = vsel %vm1117, %v1119, %v1115
    %v1121 = vmul.f32 1.0, %v1120
    %v1122 = vxor.u32 %v1100, 2147483648
    %v1123 = vmul.f32 %v1122, 1.442695
    %v1124 = vpow.pop %v1123
    %v1125 = vadd.f32 %v1124, 1.0
    %v1126 = vrcp.pop %v1125
    %v1127 = vmul.f32 %v1125, %v1126
    %v1128 = vsub.f32 1.0, %v1127
    %v1129 = vmul.f32 %v1126, %v1128
    %v1130 = vadd.f32 %v1126, %v1129
    %vm1131 = vweird.f32 %v1125
    %vm1132 = vweird.f32 %v1126
    %vm1133 = vmor %vm1131, %vm1132
    %v1134 = vsel %vm1133, %v1126, %v1130
    %v1135 = vand.u32 2147483647, %v1125
    %vm1136 = vcmp.eq.f32.partialorder %v1135, 8.507059e+37
    %v1137 = vand.u32 %v1125, 2147483648
    %v1138 = vor.u32 1.1754944e-38, %v1137
    %v1139 = vsel %vm1136, %v1138, %v1134
    %v1140 = vmul.f32 1.0, %v1139
    %v1141 = vtanh.pop %v1101
    %v1142 = vxor.u32 %v1102, 2147483648
    %v1143 = vmul.f32 %v1142, 1.442695
    %v1144 = vpow.pop %v1143
    %v1145 = vadd.f32 %v1144, 1.0
    %v1146 = vrcp.pop %v1145
    %v1147 = vmul.f32 %v1145, %v1146
    %v1148 = vsub.f32 1.0, %v1147
    %v1149 = vmul.f32 %v1146, %v1148
    %v1150 = vadd.f32 %v1146, %v1149
    %vm1151 = vweird.f32 %v1145
    %vm1152 = vweird.f32 %v1146
    %vm1153 = vmor %vm1151, %vm1152
    %v1154 = vsel %vm1153, %v1146, %v1150
    %v1155 = vand.u32 2147483647, %v1145
    %vm1156 = vcmp.eq.f32.partialorder %v1155, 8.507059e+37
    %v1157 = vand.u32 %v1145, 2147483648
    %v1158 = vor.u32 1.1754944e-38, %v1157
    %v1159 = vsel %vm1156, %v1158, %v1154
    %v1160 = vmul.f32 1.0, %v1159
    %v1161 = vmul.f32 %v1140, %v916
    %v1162 = vmul.f32 %v1121, %v1141
    %v1163 = vadd.f32 %v1161, %v1162
    %v1164 = vtanh.pop %v1163
    %v1165 = vmul.f32 %v1160, %v1164
    %s1166 = scalar_lea.vmem %s0, 8
    %v1167 = vld [vmem:[%s1166] sm:$0x3]
    %1168 = vmatpush.msra.mxu0 %v161
    %1169 = vmatpush.msra.mxu0 %v157
    %1170 = vmatpush.msra.mxu0 %v153
    %1171 = vmatpush.msra.mxu0 %v149
    %1172 = vmatpush.msra.mxu0 %v145
    %1173 = vmatpush.msra.mxu0 %v141
    %1174 = vmatpush.msra.mxu0 %v137
    %1175 = vmatpush.msra.mxu0 %v133
    %1176 = vmatpush.msra.mxu0 %v129
    %1177 = vmatpush.msra.mxu0 %v125
    %1178 = vmatpush.msra.mxu0 %v121
    %1179 = vmatpush.msra.mxu0 %v117
    %1180 = vmatpush.msra.mxu0 %v113
    %1181 = vmatpush.msra.mxu0 %v109
    %1182 = vmatpush.msra.mxu0 %v105
    %1183 = vmatpush.msra.mxu0 %v101
    %1184 = vmatmul.f32.gmra.mxu0 %v1165
    %v1185 = vpop.f32.mrf.mxu0
    %v1186 = vadd.f32 0.0, %v1185
    %1187 = vdwg.mxu0
    %1188 = vmatpush.msra.mxu0 %v162
    %1189 = vmatpush.msra.mxu0 %v158
    %1190 = vmatpush.msra.mxu0 %v154
    %1191 = vmatpush.msra.mxu0 %v150
    %1192 = vmatpush.msra.mxu0 %v146
    %1193 = vmatpush.msra.mxu0 %v142
    %1194 = vmatpush.msra.mxu0 %v138
    %1195 = vmatpush.msra.mxu0 %v134
    %1196 = vmatpush.msra.mxu0 %v130
    %1197 = vmatpush.msra.mxu0 %v126
    %1198 = vmatpush.msra.mxu0 %v122
    %1199 = vmatpush.msra.mxu0 %v118
    %1200 = vmatpush.msra.mxu0 %v114
    %1201 = vmatpush.msra.mxu0 %v110
    %1202 = vmatpush.msra.mxu0 %v106
    %1203 = vmatpush.msra.mxu0 %v102
    %1204 = vmatmul.f32.gmra.mxu0 %v1165
    %v1205 = vpop.f32.mrf.mxu0
    %v1206 = vadd.f32 0.0, %v1205
    %1207 = vdwg.mxu0
    %1208 = vmatpush.msra.mxu0 %v163
    %1209 = vmatpush.msra.mxu0 %v159
    %1210 = vmatpush.msra.mxu0 %v155
    %1211 = vmatpush.msra.mxu0 %v151
    %1212 = vmatpush.msra.mxu0 %v147
    %1213 = vmatpush.msra.mxu0 %v143
    %1214 = vmatpush.msra.mxu0 %v139
    %1215 = vmatpush.msra.mxu0 %v135
    %1216 = vmatpush.msra.mxu0 %v131
    %1217 = vmatpush.msra.mxu0 %v127
    %1218 = vmatpush.msra.mxu0 %v123
    %1219 = vmatpush.msra.mxu0 %v119
    %1220 = vmatpush.msra.mxu0 %v115
    %1221 = vmatpush.msra.mxu0 %v111
    %1222 = vmatpush.msra.mxu0 %v107
    %1223 = vmatpush.msra.mxu0 %v103
    %1224 = vmatmul.f32.gmra.mxu0 %v1165
    %v1225 = vpop.f32.mrf.mxu0
    %v1226 = vadd.f32 0.0, %v1225
    %1227 = vdwg.mxu0
    %1228 = vmatpush.msra.mxu0 %v164
    %1229 = vmatpush.msra.mxu0 %v160
    %1230 = vmatpush.msra.mxu0 %v156
    %1231 = vmatpush.msra.mxu0 %v152
    %1232 = vmatpush.msra.mxu0 %v148
    %1233 = vmatpush.msra.mxu0 %v144
    %1234 = vmatpush.msra.mxu0 %v140
    %1235 = vmatpush.msra.mxu0 %v136
    %1236 = vmatpush.msra.mxu0 %v132
    %1237 = vmatpush.msra.mxu0 %v128
    %1238 = vmatpush.msra.mxu0 %v124
    %1239 = vmatpush.msra.mxu0 %v120
    %1240 = vmatpush.msra.mxu0 %v116
    %1241 = vmatpush.msra.mxu0 %v112
    %1242 = vmatpush.msra.mxu0 %v108
    %1243 = vmatpush.msra.mxu0 %v104
    %1244 = vmatmul.f32.gmra.mxu0 %v1165
    %v1245 = vpop.f32.mrf.mxu0
    %v1246 = vadd.f32 0.0, %v1245
    %1247 = vdwg.mxu0
    %1248 = vst [vmem:[#allocation1] ss:$2 sm:$0xff] %v99
    %s1249 = scalar_lea.vmem [#allocation1], 16
    %1250 = vst [vmem:[%s1249] ss:$2 sm:$0xff] %v100
    %v1251 = vld.sshfl [vmem:[#allocation1] sm:$0xff pattern:$0x75316420]
    %v1252 = vld.sshfl [vmem:[#allocation1 + $0x8] sm:$0xff pattern:$0x75316420]
    %v1253 = vld.sshfl [vmem:[#allocation1 + $0x10] sm:$0xff pattern:$0x75316420]
    %v1254 = vld.sshfl [vmem:[#allocation1 + $0x18] sm:$0xff pattern:$0x75316420]
    %v1256 = vsel %vm256, %v1167, 0
    %v1258 = vsel %vm260, %v1251, 0
    %v1260 = vsel %vm260, %v1252, 0
    %v1262 = vsel %vm260, %v1253, 0
    %v1264 = vsel %vm260, %v1254, 0
    %1266 = vmatpush.msra.mxu0 0.0
    %1267 = vmatpush.msra.mxu0 0.0
    %1268 = vmatpush.msra.mxu0 0.0
    %1269 = vmatpush.msra.mxu0 0.0
    %1270 = vmatpush.msra.mxu0 0.0
    %1271 = vmatpush.msra.mxu0 0.0
    %1272 = vmatpush.msra.mxu0 0.0
    %1273 = vmatpush.msra.mxu0 0.0
    %1274 = vmatpush.msra.mxu0 0.0
    %1275 = vmatpush.msra.mxu0 0.0
    %1276 = vmatpush.msra.mxu0 0.0
    %1277 = vmatpush.msra.mxu0 0.0
    %1278 = vmatpush.msra.mxu0 0.0
    %1279 = vmatpush.msra.mxu0 0.0
    %1280 = vmatpush.msra.mxu0 0.0
    %1281 = vmatpush.msra.mxu0 %v1258
    %1282 = vmatmul.f32.gmra.mxu0 %v1256
    %v1283 = vpop.f32.mrf.mxu0
    %v1284 = vadd.f32 %v1186, %v1283
    %1285 = vdwg.mxu0
    %1286 = vmatpush.msra.mxu0 0.0
    %1287 = vmatpush.msra.mxu0 0.0
    %1288 = vmatpush.msra.mxu0 0.0
    %1289 = vmatpush.msra.mxu0 0.0
    %1290 = vmatpush.msra.mxu0 0.0
    %1291 = vmatpush.msra.mxu0 0.0
    %1292 = vmatpush.msra.mxu0 0.0
    %1293 = vmatpush.msra.mxu0 0.0
    %1294 = vmatpush.msra.mxu0 0.0
    %1295 = vmatpush.msra.mxu0 0.0
    %1296 = vmatpush.msra.mxu0 0.0
    %1297 = vmatpush.msra.mxu0 0.0
    %1298 = vmatpush.msra.mxu0 0.0
    %1299 = vmatpush.msra.mxu0 0.0
    %1300 = vmatpush.msra.mxu0 0.0
    %1301 = vmatpush.msra.mxu0 %v1260
    %1302 = vmatmul.f32.gmra.mxu0 %v1256
    %v1303 = vpop.f32.mrf.mxu0
    %v1304 = vadd.f32 %v1206, %v1303
    %1305 = vdwg.mxu0
    %1306 = vmatpush.msra.mxu0 0.0
    %1307 = vmatpush.msra.mxu0 0.0
    %1308 = vmatpush.msra.mxu0 0.0
    %1309 = vmatpush.msra.mxu0 0.0
    %1310 = vmatpush.msra.mxu0 0.0
    %1311 = vmatpush.msra.mxu0 0.0
    %1312 = vmatpush.msra.mxu0 0.0
    %1313 = vmatpush.msra.mxu0 0.0
    %1314 = vmatpush.msra.mxu0 0.0
    %1315 = vmatpush.msra.mxu0 0.0
    %1316 = vmatpush.msra.mxu0 0.0
    %1317 = vmatpush.msra.mxu0 0.0
    %1318 = vmatpush.msra.mxu0 0.0
    %1319 = vmatpush.msra.mxu0 0.0
    %1320 = vmatpush.msra.mxu0 0.0
    %1321 = vmatpush.msra.mxu0 %v1262
    %1322 = vmatmul.f32.gmra.mxu0 %v1256
    %v1323 = vpop.f32.mrf.mxu0
    %v1324 = vadd.f32 %v1226, %v1323
    %1325 = vdwg.mxu0
    %1326 = vmatpush.msra.mxu0 0.0
    %1327 = vmatpush.msra.mxu0 0.0
    %1328 = vmatpush.msra.mxu0 0.0
    %1329 = vmatpush.msra.mxu0 0.0
    %1330 = vmatpush.msra.mxu0 0.0
    %1331 = vmatpush.msra.mxu0 0.0
    %1332 = vmatpush.msra.mxu0 0.0
    %1333 = vmatpush.msra.mxu0 0.0
    %1334 = vmatpush.msra.mxu0 0.0
    %1335 = vmatpush.msra.mxu0 0.0
    %1336 = vmatpush.msra.mxu0 0.0
    %1337 = vmatpush.msra.mxu0 0.0
    %1338 = vmatpush.msra.mxu0 0.0
    %1339 = vmatpush.msra.mxu0 0.0
    %1340 = vmatpush.msra.mxu0 0.0
    %1341 = vmatpush.msra.mxu0 %v1264
    %1342 = vmatmul.f32.gmra.mxu0 %v1256
    %v1343 = vpop.f32.mrf.mxu0
    %v1344 = vadd.f32 %v1246, %v1343
    %1345 = vdwg.mxu0
    %v1346 = vadd.f32 %v1284, %v350
    %v1347 = vadd.f32 %v1304, %v351
    %v1348 = vadd.f32 %v1324, %v352
    %v1349 = vadd.f32 %v1344, %v353
    %v1350 = vxor.u32 %v1346, 2147483648
    %v1351 = vmul.f32 %v1350, 1.442695
    %v1352 = vpow.pop %v1351
    %v1353 = vadd.f32 %v1352, 1.0
    %v1354 = vrcp.pop %v1353
    %v1355 = vmul.f32 %v1353, %v1354
    %v1356 = vsub.f32 1.0, %v1355
    %v1357 = vmul.f32 %v1354, %v1356
    %v1358 = vadd.f32 %v1354, %v1357
    %vm1359 = vweird.f32 %v1353
    %vm1360 = vweird.f32 %v1354
    %vm1361 = vmor %vm1359, %vm1360
    %v1362 = vsel %vm1361, %v1354, %v1358
    %v1363 = vand.u32 2147483647, %v1353
    %vm1364 = vcmp.eq.f32.partialorder %v1363, 8.507059e+37
    %v1365 = vand.u32 %v1353, 2147483648
    %v1366 = vor.u32 1.1754944e-38, %v1365
    %v1367 = vsel %vm1364, %v1366, %v1362
    %v1368 = vmul.f32 1.0, %v1367
    %v1369 = vxor.u32 %v1347, 2147483648
    %v1370 = vmul.f32 %v1369, 1.442695
    %v1371 = vpow.pop %v1370
    %v1372 = vadd.f32 %v1371, 1.0
    %v1373 = vrcp.pop %v1372
    %v1374 = vmul.f32 %v1372, %v1373
    %v1375 = vsub.f32 1.0, %v1374
    %v1376 = vmul.f32 %v1373, %v1375
    %v1377 = vadd.f32 %v1373, %v1376
    %vm1378 = vweird.f32 %v1372
    %vm1379 = vweird.f32 %v1373
    %vm1380 = vmor %vm1378, %vm1379
    %v1381 = vsel %vm1380, %v1373, %v1377
    %v1382 = vand.u32 2147483647, %v1372
    %vm1383 = vcmp.eq.f32.partialorder %v1382, 8.507059e+37
    %v1384 = vand.u32 %v1372, 2147483648
    %v1385 = vor.u32 1.1754944e-38, %v1384
    %v1386 = vsel %vm1383, %v1385, %v1381
    %v1387 = vmul.f32 1.0, %v1386
    %v1388 = vtanh.pop %v1348
    %v1389 = vxor.u32 %v1349, 2147483648
    %v1390 = vmul.f32 %v1389, 1.442695
    %v1391 = vpow.pop %v1390
    %v1392 = vadd.f32 %v1391, 1.0
    %v1393 = vrcp.pop %v1392
    %v1394 = vmul.f32 %v1392, %v1393
    %v1395 = vsub.f32 1.0, %v1394
    %v1396 = vmul.f32 %v1393, %v1395
    %v1397 = vadd.f32 %v1393, %v1396
    %vm1398 = vweird.f32 %v1392
    %vm1399 = vweird.f32 %v1393
    %vm1400 = vmor %vm1398, %vm1399
    %v1401 = vsel %vm1400, %v1393, %v1397
    %v1402 = vand.u32 2147483647, %v1392
    %vm1403 = vcmp.eq.f32.partialorder %v1402, 8.507059e+37
    %v1404 = vand.u32 %v1392, 2147483648
    %v1405 = vor.u32 1.1754944e-38, %v1404
    %v1406 = vsel %vm1403, %v1405, %v1401
    %v1407 = vmul.f32 1.0, %v1406
    %v1408 = vmul.f32 %v1387, %v1163
    %v1409 = vmul.f32 %v1368, %v1388
    %v1410 = vadd.f32 %v1408, %v1409
    %v1411 = vtanh.pop %v1410
    %v1412 = vmul.f32 %v1407, %v1411
    %s1413 = scalar_lea.vmem %s0, 10
    %v1414 = vld [vmem:[%s1413] sm:$0x3]
    %1415 = vmatpush.msra.mxu0 %v161
    %1416 = vmatpush.msra.mxu0 %v157
    %1417 = vmatpush.msra.mxu0 %v153
    %1418 = vmatpush.msra.mxu0 %v149
    %1419 = vmatpush.msra.mxu0 %v145
    %1420 = vmatpush.msra.mxu0 %v141
    %1421 = vmatpush.msra.mxu0 %v137
    %1422 = vmatpush.msra.mxu0 %v133
    %1423 = vmatpush.msra.mxu0 %v129
    %1424 = vmatpush.msra.mxu0 %v125
    %1425 = vmatpush.msra.mxu0 %v121
    %1426 = vmatpush.msra.mxu0 %v117
    %1427 = vmatpush.msra.mxu0 %v113
    %1428 = vmatpush.msra.mxu0 %v109
    %1429 = vmatpush.msra.mxu0 %v105
    %1430 = vmatpush.msra.mxu0 %v101
    %1431 = vmatmul.f32.gmra.mxu0 %v1412
    %v1432 = vpop.f32.mrf.mxu0
    %v1433 = vadd.f32 0.0, %v1432
    %1434 = vdwg.mxu0
    %1435 = vmatpush.msra.mxu0 %v162
    %1436 = vmatpush.msra.mxu0 %v158
    %1437 = vmatpush.msra.mxu0 %v154
    %1438 = vmatpush.msra.mxu0 %v150
    %1439 = vmatpush.msra.mxu0 %v146
    %1440 = vmatpush.msra.mxu0 %v142
    %1441 = vmatpush.msra.mxu0 %v138
    %1442 = vmatpush.msra.mxu0 %v134
    %1443 = vmatpush.msra.mxu0 %v130
    %1444 = vmatpush.msra.mxu0 %v126
    %1445 = vmatpush.msra.mxu0 %v122
    %1446 = vmatpush.msra.mxu0 %v118
    %1447 = vmatpush.msra.mxu0 %v114
    %1448 = vmatpush.msra.mxu0 %v110
    %1449 = vmatpush.msra.mxu0 %v106
    %1450 = vmatpush.msra.mxu0 %v102
    %1451 = vmatmul.f32.gmra.mxu0 %v1412
    %v1452 = vpop.f32.mrf.mxu0
    %v1453 = vadd.f32 0.0, %v1452
    %1454 = vdwg.mxu0
    %1455 = vmatpush.msra.mxu0 %v163
    %1456 = vmatpush.msra.mxu0 %v159
    %1457 = vmatpush.msra.mxu0 %v155
    %1458 = vmatpush.msra.mxu0 %v151
    %1459 = vmatpush.msra.mxu0 %v147
    %1460 = vmatpush.msra.mxu0 %v143
    %1461 = vmatpush.msra.mxu0 %v139
    %1462 = vmatpush.msra.mxu0 %v135
    %1463 = vmatpush.msra.mxu0 %v131
    %1464 = vmatpush.msra.mxu0 %v127
    %1465 = vmatpush.msra.mxu0 %v123
    %1466 = vmatpush.msra.mxu0 %v119
    %1467 = vmatpush.msra.mxu0 %v115
    %1468 = vmatpush.msra.mxu0 %v111
    %1469 = vmatpush.msra.mxu0 %v107
    %1470 = vmatpush.msra.mxu0 %v103
    %1471 = vmatmul.f32.gmra.mxu0 %v1412
    %v1472 = vpop.f32.mrf.mxu0
    %v1473 = vadd.f32 0.0, %v1472
    %1474 = vdwg.mxu0
    %1475 = vmatpush.msra.mxu0 %v164
    %1476 = vmatpush.msra.mxu0 %v160
    %1477 = vmatpush.msra.mxu0 %v156
    %1478 = vmatpush.msra.mxu0 %v152
    %1479 = vmatpush.msra.mxu0 %v148
    %1480 = vmatpush.msra.mxu0 %v144
    %1481 = vmatpush.msra.mxu0 %v140
    %1482 = vmatpush.msra.mxu0 %v136
    %1483 = vmatpush.msra.mxu0 %v132
    %1484 = vmatpush.msra.mxu0 %v128
    %1485 = vmatpush.msra.mxu0 %v124
    %1486 = vmatpush.msra.mxu0 %v120
    %1487 = vmatpush.msra.mxu0 %v116
    %1488 = vmatpush.msra.mxu0 %v112
    %1489 = vmatpush.msra.mxu0 %v108
    %1490 = vmatpush.msra.mxu0 %v104
    %1491 = vmatmul.f32.gmra.mxu0 %v1412
    %v1492 = vpop.f32.mrf.mxu0
    %v1493 = vadd.f32 0.0, %v1492
    %1494 = vdwg.mxu0
    %1495 = vst [vmem:[#allocation1] ss:$2 sm:$0xff] %v99
    %s1496 = scalar_lea.vmem [#allocation1], 16
    %1497 = vst [vmem:[%s1496] ss:$2 sm:$0xff] %v100
    %v1498 = vld.sshfl [vmem:[#allocation1] sm:$0xff pattern:$0x75316420]
    %v1499 = vld.sshfl [vmem:[#allocation1 + $0x8] sm:$0xff pattern:$0x75316420]
    %v1500 = vld.sshfl [vmem:[#allocation1 + $0x10] sm:$0xff pattern:$0x75316420]
    %v1501 = vld.sshfl [vmem:[#allocation1 + $0x18] sm:$0xff pattern:$0x75316420]
    %v1503 = vsel %vm256, %v1414, 0
    %v1505 = vsel %vm260, %v1498, 0
    %v1507 = vsel %vm260, %v1499, 0
    %v1509 = vsel %vm260, %v1500, 0
    %v1511 = vsel %vm260, %v1501, 0
    %1513 = vmatpush.msra.mxu0 0.0
    %1514 = vmatpush.msra.mxu0 0.0
    %1515 = vmatpush.msra.mxu0 0.0
    %1516 = vmatpush.msra.mxu0 0.0
    %1517 = vmatpush.msra.mxu0 0.0
    %1518 = vmatpush.msra.mxu0 0.0
    %1519 = vmatpush.msra.mxu0 0.0
    %1520 = vmatpush.msra.mxu0 0.0
    %1521 = vmatpush.msra.mxu0 0.0
    %1522 = vmatpush.msra.mxu0 0.0
    %1523 = vmatpush.msra.mxu0 0.0
    %1524 = vmatpush.msra.mxu0 0.0
    %1525 = vmatpush.msra.mxu0 0.0
    %1526 = vmatpush.msra.mxu0 0.0
    %1527 = vmatpush.msra.mxu0 0.0
    %1528 = vmatpush.msra.mxu0 %v1505
    %1529 = vmatmul.f32.gmra.mxu0 %v1503
    %v1530 = vpop.f32.mrf.mxu0
    %v1531 = vadd.f32 %v1433, %v1530
    %1532 = vdwg.mxu0
    %1533 = vmatpush.msra.mxu0 0.0
    %1534 = vmatpush.msra.mxu0 0.0
    %1535 = vmatpush.msra.mxu0 0.0
    %1536 = vmatpush.msra.mxu0 0.0
    %1537 = vmatpush.msra.mxu0 0.0
    %1538 = vmatpush.msra.mxu0 0.0
    %1539 = vmatpush.msra.mxu0 0.0
    %1540 = vmatpush.msra.mxu0 0.0
    %1541 = vmatpush.msra.mxu0 0.0
    %1542 = vmatpush.msra.mxu0 0.0
    %1543 = vmatpush.msra.mxu0 0.0
    %1544 = vmatpush.msra.mxu0 0.0
    %1545 = vmatpush.msra.mxu0 0.0
    %1546 = vmatpush.msra.mxu0 0.0
    %1547 = vmatpush.msra.mxu0 0.0
    %1548 = vmatpush.msra.mxu0 %v1507
    %1549 = vmatmul.f32.gmra.mxu0 %v1503
    %v1550 = vpop.f32.mrf.mxu0
    %v1551 = vadd.f32 %v1453, %v1550
    %1552 = vdwg.mxu0
    %1553 = vmatpush.msra.mxu0 0.0
    %1554 = vmatpush.msra.mxu0 0.0
    %1555 = vmatpush.msra.mxu0 0.0
    %1556 = vmatpush.msra.mxu0 0.0
    %1557 = vmatpush.msra.mxu0 0.0
    %1558 = vmatpush.msra.mxu0 0.0
    %1559 = vmatpush.msra.mxu0 0.0
    %1560 = vmatpush.msra.mxu0 0.0
    %1561 = vmatpush.msra.mxu0 0.0
    %1562 = vmatpush.msra.mxu0 0.0
    %1563 = vmatpush.msra.mxu0 0.0
    %1564 = vmatpush.msra.mxu0 0.0
    %1565 = vmatpush.msra.mxu0 0.0
    %1566 = vmatpush.msra.mxu0 0.0
    %1567 = vmatpush.msra.mxu0 0.0
    %1568 = vmatpush.msra.mxu0 %v1509
    %1569 = vmatmul.f32.gmra.mxu0 %v1503
    %v1570 = vpop.f32.mrf.mxu0
    %v1571 = vadd.f32 %v1473, %v1570
    %1572 = vdwg.mxu0
    %1573 = vmatpush.msra.mxu0 0.0
    %1574 = vmatpush.msra.mxu0 0.0
    %1575 = vmatpush.msra.mxu0 0.0
    %1576 = vmatpush.msra.mxu0 0.0
    %1577 = vmatpush.msra.mxu0 0.0
    %1578 = vmatpush.msra.mxu0 0.0
    %1579 = vmatpush.msra.mxu0 0.0
    %1580 = vmatpush.msra.mxu0 0.0
    %1581 = vmatpush.msra.mxu0 0.0
    %1582 = vmatpush.msra.mxu0 0.0
    %1583 = vmatpush.msra.mxu0 0.0
    %1584 = vmatpush.msra.mxu0 0.0
    %1585 = vmatpush.msra.mxu0 0.0
    %1586 = vmatpush.msra.mxu0 0.0
    %1587 = vmatpush.msra.mxu0 0.0
    %1588 = vmatpush.msra.mxu0 %v1511
    %1589 = vmatmul.f32.gmra.mxu0 %v1503
    %v1590 = vpop.f32.mrf.mxu0
    %v1591 = vadd.f32 %v1493, %v1590
    %1592 = vdwg.mxu0
    %v1593 = vadd.f32 %v1531, %v350
    %v1594 = vadd.f32 %v1551, %v351
    %v1595 = vadd.f32 %v1571, %v352
    %v1596 = vadd.f32 %v1591, %v353
    %v1597 = vxor.u32 %v1593, 2147483648
    %v1598 = vmul.f32 %v1597, 1.442695
    %v1599 = vpow.pop %v1598
    %v1600 = vadd.f32 %v1599, 1.0
    %v1601 = vrcp.pop %v1600
    %v1602 = vmul.f32 %v1600, %v1601
    %v1603 = vsub.f32 1.0, %v1602
    %v1604 = vmul.f32 %v1601, %v1603
    %v1605 = vadd.f32 %v1601, %v1604
    %vm1606 = vweird.f32 %v1600
    %vm1607 = vweird.f32 %v1601
    %vm1608 = vmor %vm1606, %vm1607
    %v1609 = vsel %vm1608, %v1601, %v1605
    %v1610 = vand.u32 2147483647, %v1600
    %vm1611 = vcmp.eq.f32.partialorder %v1610, 8.507059e+37
    %v1612 = vand.u32 %v1600, 2147483648
    %v1613 = vor.u32 1.1754944e-38, %v1612
    %v1614 = vsel %vm1611, %v1613, %v1609
    %v1615 = vmul.f32 1.0, %v1614
    %v1616 = vxor.u32 %v1594, 2147483648
    %v1617 = vmul.f32 %v1616, 1.442695
    %v1618 = vpow.pop %v1617
    %v1619 = vadd.f32 %v1618, 1.0
    %v1620 = vrcp.pop %v1619
    %v1621 = vmul.f32 %v1619, %v1620
    %v1622 = vsub.f32 1.0, %v1621
    %v1623 = vmul.f32 %v1620, %v1622
    %v1624 = vadd.f32 %v1620, %v1623
    %vm1625 = vweird.f32 %v1619
    %vm1626 = vweird.f32 %v1620
    %vm1627 = vmor %vm1625, %vm1626
    %v1628 = vsel %vm1627, %v1620, %v1624
    %v1629 = vand.u32 2147483647, %v1619
    %vm1630 = vcmp.eq.f32.partialorder %v1629, 8.507059e+37
    %v1631 = vand.u32 %v1619, 2147483648
    %v1632 = vor.u32 1.1754944e-38, %v1631
    %v1633 = vsel %vm1630, %v1632, %v1628
    %v1634 = vmul.f32 1.0, %v1633
    %v1635 = vtanh.pop %v1595
    %v1636 = vxor.u32 %v1596, 2147483648
    %v1637 = vmul.f32 %v1636, 1.442695
    %v1638 = vpow.pop %v1637
    %v1639 = vadd.f32 %v1638, 1.0
    %v1640 = vrcp.pop %v1639
    %v1641 = vmul.f32 %v1639, %v1640
    %v1642 = vsub.f32 1.0, %v1641
    %v1643 = vmul.f32 %v1640, %v1642
    %v1644 = vadd.f32 %v1640, %v1643
    %vm1645 = vweird.f32 %v1639
    %vm1646 = vweird.f32 %v1640
    %vm1647 = vmor %vm1645, %vm1646
    %v1648 = vsel %vm1647, %v1640, %v1644
    %v1649 = vand.u32 2147483647, %v1639
    %vm1650 = vcmp.eq.f32.partialorder %v1649, 8.507059e+37
    %v1651 = vand.u32 %v1639, 2147483648
    %v1652 = vor.u32 1.1754944e-38, %v1651
    %v1653 = vsel %vm1650, %v1652, %v1648
    %v1654 = vmul.f32 1.0, %v1653
    %v1655 = vmul.f32 %v1634, %v1410
    %v1656 = vmul.f32 %v1615, %v1635
    %v1657 = vadd.f32 %v1655, %v1656
    %v1658 = vtanh.pop %v1657
    %v1659 = vmul.f32 %v1654, %v1658
    %s1660 = scalar_lea.vmem %s0, 12
    %v1661 = vld [vmem:[%s1660] sm:$0x3]
    %1662 = vmatpush.msra.mxu0 %v161
    %1663 = vmatpush.msra.mxu0 %v157
    %1664 = vmatpush.msra.mxu0 %v153
    %1665 = vmatpush.msra.mxu0 %v149
    %1666 = vmatpush.msra.mxu0 %v145
    %1667 = vmatpush.msra.mxu0 %v141
    %1668 = vmatpush.msra.mxu0 %v137
    %1669 = vmatpush.msra.mxu0 %v133
    %1670 = vmatpush.msra.mxu0 %v129
    %1671 = vmatpush.msra.mxu0 %v125
    %1672 = vmatpush.msra.mxu0 %v121
    %1673 = vmatpush.msra.mxu0 %v117
    %1674 = vmatpush.msra.mxu0 %v113
    %1675 = vmatpush.msra.mxu0 %v109
    %1676 = vmatpush.msra.mxu0 %v105
    %1677 = vmatpush.msra.mxu0 %v101
    %1678 = vmatmul.f32.gmra.mxu0 %v1659
    %v1679 = vpop.f32.mrf.mxu0
    %v1680 = vadd.f32 0.0, %v1679
    %1681 = vdwg.mxu0
    %1682 = vmatpush.msra.mxu0 %v162
    %1683 = vmatpush.msra.mxu0 %v158
    %1684 = vmatpush.msra.mxu0 %v154
    %1685 = vmatpush.msra.mxu0 %v150
    %1686 = vmatpush.msra.mxu0 %v146
    %1687 = vmatpush.msra.mxu0 %v142
    %1688 = vmatpush.msra.mxu0 %v138
    %1689 = vmatpush.msra.mxu0 %v134
    %1690 = vmatpush.msra.mxu0 %v130
    %1691 = vmatpush.msra.mxu0 %v126
    %1692 = vmatpush.msra.mxu0 %v122
    %1693 = vmatpush.msra.mxu0 %v118
    %1694 = vmatpush.msra.mxu0 %v114
    %1695 = vmatpush.msra.mxu0 %v110
    %1696 = vmatpush.msra.mxu0 %v106
    %1697 = vmatpush.msra.mxu0 %v102
    %1698 = vmatmul.f32.gmra.mxu0 %v1659
    %v1699 = vpop.f32.mrf.mxu0
    %v1700 = vadd.f32 0.0, %v1699
    %1701 = vdwg.mxu0
    %1702 = vmatpush.msra.mxu0 %v163
    %1703 = vmatpush.msra.mxu0 %v159
    %1704 = vmatpush.msra.mxu0 %v155
    %1705 = vmatpush.msra.mxu0 %v151
    %1706 = vmatpush.msra.mxu0 %v147
    %1707 = vmatpush.msra.mxu0 %v143
    %1708 = vmatpush.msra.mxu0 %v139
    %1709 = vmatpush.msra.mxu0 %v135
    %1710 = vmatpush.msra.mxu0 %v131
    %1711 = vmatpush.msra.mxu0 %v127
    %1712 = vmatpush.msra.mxu0 %v123
    %1713 = vmatpush.msra.mxu0 %v119
    %1714 = vmatpush.msra.mxu0 %v115
    %1715 = vmatpush.msra.mxu0 %v111
    %1716 = vmatpush.msra.mxu0 %v107
    %1717 = vmatpush.msra.mxu0 %v103
    %1718 = vmatmul.f32.gmra.mxu0 %v1659
    %v1719 = vpop.f32.mrf.mxu0
    %v1720 = vadd.f32 0.0, %v1719
    %1721 = vdwg.mxu0
    %1722 = vmatpush.msra.mxu0 %v164
    %1723 = vmatpush.msra.mxu0 %v160
    %1724 = vmatpush.msra.mxu0 %v156
    %1725 = vmatpush.msra.mxu0 %v152
    %1726 = vmatpush.msra.mxu0 %v148
    %1727 = vmatpush.msra.mxu0 %v144
    %1728 = vmatpush.msra.mxu0 %v140
    %1729 = vmatpush.msra.mxu0 %v136
    %1730 = vmatpush.msra.mxu0 %v132
    %1731 = vmatpush.msra.mxu0 %v128
    %1732 = vmatpush.msra.mxu0 %v124
    %1733 = vmatpush.msra.mxu0 %v120
    %1734 = vmatpush.msra.mxu0 %v116
    %1735 = vmatpush.msra.mxu0 %v112
    %1736 = vmatpush.msra.mxu0 %v108
    %1737 = vmatpush.msra.mxu0 %v104
    %1738 = vmatmul.f32.gmra.mxu0 %v1659
    %v1739 = vpop.f32.mrf.mxu0
    %v1740 = vadd.f32 0.0, %v1739
    %1741 = vdwg.mxu0
    %1742 = vst [vmem:[#allocation1] ss:$2 sm:$0xff] %v99
    %s1743 = scalar_lea.vmem [#allocation1], 16
    %1744 = vst [vmem:[%s1743] ss:$2 sm:$0xff] %v100
    %v1745 = vld.sshfl [vmem:[#allocation1] sm:$0xff pattern:$0x75316420]
    %v1746 = vld.sshfl [vmem:[#allocation1 + $0x8] sm:$0xff pattern:$0x75316420]
    %v1747 = vld.sshfl [vmem:[#allocation1 + $0x10] sm:$0xff pattern:$0x75316420]
    %v1748 = vld.sshfl [vmem:[#allocation1 + $0x18] sm:$0xff pattern:$0x75316420]
    %v1750 = vsel %vm256, %v1661, 0
    %v1752 = vsel %vm260, %v1745, 0
    %v1754 = vsel %vm260, %v1746, 0
    %v1756 = vsel %vm260, %v1747, 0
    %v1758 = vsel %vm260, %v1748, 0
    %1760 = vmatpush.msra.mxu0 0.0
    %1761 = vmatpush.msra.mxu0 0.0
    %1762 = vmatpush.msra.mxu0 0.0
    %1763 = vmatpush.msra.mxu0 0.0
    %1764 = vmatpush.msra.mxu0 0.0
    %1765 = vmatpush.msra.mxu0 0.0
    %1766 = vmatpush.msra.mxu0 0.0
    %1767 = vmatpush.msra.mxu0 0.0
    %1768 = vmatpush.msra.mxu0 0.0
    %1769 = vmatpush.msra.mxu0 0.0
    %1770 = vmatpush.msra.mxu0 0.0
    %1771 = vmatpush.msra.mxu0 0.0
    %1772 = vmatpush.msra.mxu0 0.0
    %1773 = vmatpush.msra.mxu0 0.0
    %1774 = vmatpush.msra.mxu0 0.0
    %1775 = vmatpush.msra.mxu0 %v1752
    %1776 = vmatmul.f32.gmra.mxu0 %v1750
    %v1777 = vpop.f32.mrf.mxu0
    %v1778 = vadd.f32 %v1680, %v1777
    %1779 = vdwg.mxu0
    %1780 = vmatpush.msra.mxu0 0.0
    %1781 = vmatpush.msra.mxu0 0.0
    %1782 = vmatpush.msra.mxu0 0.0
    %1783 = vmatpush.msra.mxu0 0.0
    %1784 = vmatpush.msra.mxu0 0.0
    %1785 = vmatpush.msra.mxu0 0.0
    %1786 = vmatpush.msra.mxu0 0.0
    %1787 = vmatpush.msra.mxu0 0.0
    %1788 = vmatpush.msra.mxu0 0.0
    %1789 = vmatpush.msra.mxu0 0.0
    %1790 = vmatpush.msra.mxu0 0.0
    %1791 = vmatpush.msra.mxu0 0.0
    %1792 = vmatpush.msra.mxu0 0.0
    %1793 = vmatpush.msra.mxu0 0.0
    %1794 = vmatpush.msra.mxu0 0.0
    %1795 = vmatpush.msra.mxu0 %v1754
    %1796 = vmatmul.f32.gmra.mxu0 %v1750
    %v1797 = vpop.f32.mrf.mxu0
    %v1798 = vadd.f32 %v1700, %v1797
    %1799 = vdwg.mxu0
    %1800 = vmatpush.msra.mxu0 0.0
    %1801 = vmatpush.msra.mxu0 0.0
    %1802 = vmatpush.msra.mxu0 0.0
    %1803 = vmatpush.msra.mxu0 0.0
    %1804 = vmatpush.msra.mxu0 0.0
    %1805 = vmatpush.msra.mxu0 0.0
    %1806 = vmatpush.msra.mxu0 0.0
    %1807 = vmatpush.msra.mxu0 0.0
    %1808 = vmatpush.msra.mxu0 0.0
    %1809 = vmatpush.msra.mxu0 0.0
    %1810 = vmatpush.msra.mxu0 0.0
    %1811 = vmatpush.msra.mxu0 0.0
    %1812 = vmatpush.msra.mxu0 0.0
    %1813 = vmatpush.msra.mxu0 0.0
    %1814 = vmatpush.msra.mxu0 0.0
    %1815 = vmatpush.msra.mxu0 %v1756
    %1816 = vmatmul.f32.gmra.mxu0 %v1750
    %v1817 = vpop.f32.mrf.mxu0
    %v1818 = vadd.f32 %v1720, %v1817
    %1819 = vdwg.mxu0
    %1820 = vmatpush.msra.mxu0 0.0
    %1821 = vmatpush.msra.mxu0 0.0
    %1822 = vmatpush.msra.mxu0 0.0
    %1823 = vmatpush.msra.mxu0 0.0
    %1824 = vmatpush.msra.mxu0 0.0
    %1825 = vmatpush.msra.mxu0 0.0
    %1826 = vmatpush.msra.mxu0 0.0
    %1827 = vmatpush.msra.mxu0 0.0
    %1828 = vmatpush.msra.mxu0 0.0
    %1829 = vmatpush.msra.mxu0 0.0
    %1830 = vmatpush.msra.mxu0 0.0
    %1831 = vmatpush.msra.mxu0 0.0
    %1832 = vmatpush.msra.mxu0 0.0
    %1833 = vmatpush.msra.mxu0 0.0
    %1834 = vmatpush.msra.mxu0 0.0
    %1835 = vmatpush.msra.mxu0 %v1758
    %1836 = vmatmul.f32.gmra.mxu0 %v1750
    %v1837 = vpop.f32.mrf.mxu0
    %v1838 = vadd.f32 %v1740, %v1837
    %1839 = vdwg.mxu0
    %v1840 = vadd.f32 %v1778, %v350
    %v1841 = vadd.f32 %v1798, %v351
    %v1842 = vadd.f32 %v1818, %v352
    %v1843 = vadd.f32 %v1838, %v353
    %v1844 = vxor.u32 %v1840, 2147483648
    %v1845 = vmul.f32 %v1844, 1.442695
    %v1846 = vpow.pop %v1845
    %v1847 = vadd.f32 %v1846, 1.0
    %v1848 = vrcp.pop %v1847
    %v1849 = vmul.f32 %v1847, %v1848
    %v1850 = vsub.f32 1.0, %v1849
    %v1851 = vmul.f32 %v1848, %v1850
    %v1852 = vadd.f32 %v1848, %v1851
    %vm1853 = vweird.f32 %v1847
    %vm1854 = vweird.f32 %v1848
    %vm1855 = vmor %vm1853, %vm1854
    %v1856 = vsel %vm1855, %v1848, %v1852
    %v1857 = vand.u32 2147483647, %v1847
    %vm1858 = vcmp.eq.f32.partialorder %v1857, 8.507059e+37
    %v1859 = vand.u32 %v1847, 2147483648
    %v1860 = vor.u32 1.1754944e-38, %v1859
    %v1861 = vsel %vm1858, %v1860, %v1856
    %v1862 = vmul.f32 1.0, %v1861
    %v1863 = vxor.u32 %v1841, 2147483648
    %v1864 = vmul.f32 %v1863, 1.442695
    %v1865 = vpow.pop %v1864
    %v1866 = vadd.f32 %v1865, 1.0
    %v1867 = vrcp.pop %v1866
    %v1868 = vmul.f32 %v1866, %v1867
    %v1869 = vsub.f32 1.0, %v1868
    %v1870 = vmul.f32 %v1867, %v1869
    %v1871 = vadd.f32 %v1867, %v1870
    %vm1872 = vweird.f32 %v1866
    %vm1873 = vweird.f32 %v1867
    %vm1874 = vmor %vm1872, %vm1873
    %v1875 = vsel %vm1874, %v1867, %v1871
    %v1876 = vand.u32 2147483647, %v1866
    %vm1877 = vcmp.eq.f32.partialorder %v1876, 8.507059e+37
    %v1878 = vand.u32 %v1866, 2147483648
    %v1879 = vor.u32 1.1754944e-38, %v1878
    %v1880 = vsel %vm1877, %v1879, %v1875
    %v1881 = vmul.f32 1.0, %v1880
    %v1882 = vtanh.pop %v1842
    %v1883 = vxor.u32 %v1843, 2147483648
    %v1884 = vmul.f32 %v1883, 1.442695
    %v1885 = vpow.pop %v1884
    %v1886 = vadd.f32 %v1885, 1.0
    %v1887 = vrcp.pop %v1886
    %v1888 = vmul.f32 %v1886, %v1887
    %v1889 = vsub.f32 1.0, %v1888
    %v1890 = vmul.f32 %v1887, %v1889
    %v1891 = vadd.f32 %v1887, %v1890
    %vm1892 = vweird.f32 %v1886
    %vm1893 = vweird.f32 %v1887
    %vm1894 = vmor %vm1892, %vm1893
    %v1895 = vsel %vm1894, %v1887, %v1891
    %v1896 = vand.u32 2147483647, %v1886
    %vm1897 = vcmp.eq.f32.partialorder %v1896, 8.507059e+37
    %v1898 = vand.u32 %v1886, 2147483648
    %v1899 = vor.u32 1.1754944e-38, %v1898
    %v1900 = vsel %vm1897, %v1899, %v1895
    %v1901 = vmul.f32 1.0, %v1900
    %v1902 = vmul.f32 %v1881, %v1657
    %v1903 = vmul.f32 %v1862, %v1882
    %v1904 = vadd.f32 %v1902, %v1903
    %v1905 = vtanh.pop %v1904
    %v1906 = vmul.f32 %v1901, %v1905
    %s1907 = scalar_lea.vmem %s0, 14
    %v1908 = vld [vmem:[%s1907] sm:$0x3]
    %1909 = vmatpush.msra.mxu0 %v161
    %1910 = vmatpush.msra.mxu0 %v157
    %1911 = vmatpush.msra.mxu0 %v153
    %1912 = vmatpush.msra.mxu0 %v149
    %1913 = vmatpush.msra.mxu0 %v145
    %1914 = vmatpush.msra.mxu0 %v141
    %1915 = vmatpush.msra.mxu0 %v137
    %1916 = vmatpush.msra.mxu0 %v133
    %1917 = vmatpush.msra.mxu0 %v129
    %1918 = vmatpush.msra.mxu0 %v125
    %1919 = vmatpush.msra.mxu0 %v121
    %1920 = vmatpush.msra.mxu0 %v117
    %1921 = vmatpush.msra.mxu0 %v113
    %1922 = vmatpush.msra.mxu0 %v109
    %1923 = vmatpush.msra.mxu0 %v105
    %1924 = vmatpush.msra.mxu0 %v101
    %1925 = vmatmul.f32.gmra.mxu0 %v1906
    %v1926 = vpop.f32.mrf.mxu0
    %v1927 = vadd.f32 0.0, %v1926
    %1928 = vdwg.mxu0
    %1929 = vmatpush.msra.mxu0 %v162
    %1930 = vmatpush.msra.mxu0 %v158
    %1931 = vmatpush.msra.mxu0 %v154
    %1932 = vmatpush.msra.mxu0 %v150
    %1933 = vmatpush.msra.mxu0 %v146
    %1934 = vmatpush.msra.mxu0 %v142
    %1935 = vmatpush.msra.mxu0 %v138
    %1936 = vmatpush.msra.mxu0 %v134
    %1937 = vmatpush.msra.mxu0 %v130
    %1938 = vmatpush.msra.mxu0 %v126
    %1939 = vmatpush.msra.mxu0 %v122
    %1940 = vmatpush.msra.mxu0 %v118
    %1941 = vmatpush.msra.mxu0 %v114
    %1942 = vmatpush.msra.mxu0 %v110
    %1943 = vmatpush.msra.mxu0 %v106
    %1944 = vmatpush.msra.mxu0 %v102
    %1945 = vmatmul.f32.gmra.mxu0 %v1906
    %v1946 = vpop.f32.mrf.mxu0
    %v1947 = vadd.f32 0.0, %v1946
    %1948 = vdwg.mxu0
    %1949 = vmatpush.msra.mxu0 %v163
    %1950 = vmatpush.msra.mxu0 %v159
    %1951 = vmatpush.msra.mxu0 %v155
    %1952 = vmatpush.msra.mxu0 %v151
    %1953 = vmatpush.msra.mxu0 %v147
    %1954 = vmatpush.msra.mxu0 %v143
    %1955 = vmatpush.msra.mxu0 %v139
    %1956 = vmatpush.msra.mxu0 %v135
    %1957 = vmatpush.msra.mxu0 %v131
    %1958 = vmatpush.msra.mxu0 %v127
    %1959 = vmatpush.msra.mxu0 %v123
    %1960 = vmatpush.msra.mxu0 %v119
    %1961 = vmatpush.msra.mxu0 %v115
    %1962 = vmatpush.msra.mxu0 %v111
    %1963 = vmatpush.msra.mxu0 %v107
    %1964 = vmatpush.msra.mxu0 %v103
    %1965 = vmatmul.f32.gmra.mxu0 %v1906
    %v1966 = vpop.f32.mrf.mxu0
    %v1967 = vadd.f32 0.0, %v1966
    %1968 = vdwg.mxu0
    %1969 = vmatpush.msra.mxu0 %v164
    %1970 = vmatpush.msra.mxu0 %v160
    %1971 = vmatpush.msra.mxu0 %v156
    %1972 = vmatpush.msra.mxu0 %v152
    %1973 = vmatpush.msra.mxu0 %v148
    %1974 = vmatpush.msra.mxu0 %v144
    %1975 = vmatpush.msra.mxu0 %v140
    %1976 = vmatpush.msra.mxu0 %v136
    %1977 = vmatpush.msra.mxu0 %v132
    %1978 = vmatpush.msra.mxu0 %v128
    %1979 = vmatpush.msra.mxu0 %v124
    %1980 = vmatpush.msra.mxu0 %v120
    %1981 = vmatpush.msra.mxu0 %v116
    %1982 = vmatpush.msra.mxu0 %v112
    %1983 = vmatpush.msra.mxu0 %v108
    %1984 = vmatpush.msra.mxu0 %v104
    %1985 = vmatmul.f32.gmra.mxu0 %v1906
    %v1986 = vpop.f32.mrf.mxu0
    %v1987 = vadd.f32 0.0, %v1986
    %1988 = vdwg.mxu0
    %1989 = vst [vmem:[#allocation1] ss:$2 sm:$0xff] %v99
    %s1990 = scalar_lea.vmem [#allocation1], 16
    %1991 = vst [vmem:[%s1990] ss:$2 sm:$0xff] %v100
    %v1992 = vld.sshfl [vmem:[#allocation1] sm:$0xff pattern:$0x75316420]
    %v1993 = vld.sshfl [vmem:[#allocation1 + $0x8] sm:$0xff pattern:$0x75316420]
    %v1994 = vld.sshfl [vmem:[#allocation1 + $0x10] sm:$0xff pattern:$0x75316420]
    %v1995 = vld.sshfl [vmem:[#allocation1 + $0x18] sm:$0xff pattern:$0x75316420]
    %v1997 = vsel %vm256, %v1908, 0
    %v1999 = vsel %vm260, %v1992, 0
    %v2001 = vsel %vm260, %v1993, 0
    %v2003 = vsel %vm260, %v1994, 0
    %v2005 = vsel %vm260, %v1995, 0
    %2007 = vmatpush.msra.mxu0 0.0
    %2008 = vmatpush.msra.mxu0 0.0
    %2009 = vmatpush.msra.mxu0 0.0
    %2010 = vmatpush.msra.mxu0 0.0
    %2011 = vmatpush.msra.mxu0 0.0
    %2012 = vmatpush.msra.mxu0 0.0
    %2013 = vmatpush.msra.mxu0 0.0
    %2014 = vmatpush.msra.mxu0 0.0
    %2015 = vmatpush.msra.mxu0 0.0
    %2016 = vmatpush.msra.mxu0 0.0
    %2017 = vmatpush.msra.mxu0 0.0
    %2018 = vmatpush.msra.mxu0 0.0
    %2019 = vmatpush.msra.mxu0 0.0
    %2020 = vmatpush.msra.mxu0 0.0
    %2021 = vmatpush.msra.mxu0 0.0
    %2022 = vmatpush.msra.mxu0 %v1999
    %2023 = vmatmul.f32.gmra.mxu0 %v1997
    %v2024 = vpop.f32.mrf.mxu0
    %v2025 = vadd.f32 %v1927, %v2024
    %2026 = vdwg.mxu0
    %2027 = vmatpush.msra.mxu0 0.0
    %2028 = vmatpush.msra.mxu0 0.0
    %2029 = vmatpush.msra.mxu0 0.0
    %2030 = vmatpush.msra.mxu0 0.0
    %2031 = vmatpush.msra.mxu0 0.0
    %2032 = vmatpush.msra.mxu0 0.0
    %2033 = vmatpush.msra.mxu0 0.0
    %2034 = vmatpush.msra.mxu0 0.0
    %2035 = vmatpush.msra.mxu0 0.0
    %2036 = vmatpush.msra.mxu0 0.0
    %2037 = vmatpush.msra.mxu0 0.0
    %2038 = vmatpush.msra.mxu0 0.0
    %2039 = vmatpush.msra.mxu0 0.0
    %2040 = vmatpush.msra.mxu0 0.0
    %2041 = vmatpush.msra.mxu0 0.0
    %2042 = vmatpush.msra.mxu0 %v2001
    %2043 = vmatmul.f32.gmra.mxu0 %v1997
    %v2044 = vpop.f32.mrf.mxu0
    %v2045 = vadd.f32 %v1947, %v2044
    %2046 = vdwg.mxu0
    %2047 = vmatpush.msra.mxu0 0.0
    %2048 = vmatpush.msra.mxu0 0.0
    %2049 = vmatpush.msra.mxu0 0.0
    %2050 = vmatpush.msra.mxu0 0.0
    %2051 = vmatpush.msra.mxu0 0.0
    %2052 = vmatpush.msra.mxu0 0.0
    %2053 = vmatpush.msra.mxu0 0.0
    %2054 = vmatpush.msra.mxu0 0.0
    %2055 = vmatpush.msra.mxu0 0.0
    %2056 = vmatpush.msra.mxu0 0.0
    %2057 = vmatpush.msra.mxu0 0.0
    %2058 = vmatpush.msra.mxu0 0.0
    %2059 = vmatpush.msra.mxu0 0.0
    %2060 = vmatpush.msra.mxu0 0.0
    %2061 = vmatpush.msra.mxu0 0.0
    %2062 = vmatpush.msra.mxu0 %v2003
    %2063 = vmatmul.f32.gmra.mxu0 %v1997
    %v2064 = vpop.f32.mrf.mxu0
    %v2065 = vadd.f32 %v1967, %v2064
    %2066 = vdwg.mxu0
    %2067 = vmatpush.msra.mxu0 0.0
    %2068 = vmatpush.msra.mxu0 0.0
    %2069 = vmatpush.msra.mxu0 0.0
    %2070 = vmatpush.msra.mxu0 0.0
    %2071 = vmatpush.msra.mxu0 0.0
    %2072 = vmatpush.msra.mxu0 0.0
    %2073 = vmatpush.msra.mxu0 0.0
    %2074 = vmatpush.msra.mxu0 0.0
    %2075 = vmatpush.msra.mxu0 0.0
    %2076 = vmatpush.msra.mxu0 0.0
    %2077 = vmatpush.msra.mxu0 0.0
    %2078 = vmatpush.msra.mxu0 0.0
    %2079 = vmatpush.msra.mxu0 0.0
    %2080 = vmatpush.msra.mxu0 0.0
    %2081 = vmatpush.msra.mxu0 0.0
    %2082 = vmatpush.msra.mxu0 %v2005
    %2083 = vmatmul.f32.gmra.mxu0 %v1997
    %v2084 = vpop.f32.mrf.mxu0
    %v2085 = vadd.f32 %v1987, %v2084
    %2086 = vdwg.mxu0
    %v2087 = vadd.f32 %v2025, %v350
    %v2088 = vadd.f32 %v2045, %v351
    %v2089 = vadd.f32 %v2065, %v352
    %v2090 = vadd.f32 %v2085, %v353
    %v2091 = vxor.u32 %v2087, 2147483648
    %v2092 = vmul.f32 %v2091, 1.442695
    %v2093 = vpow.pop %v2092
    %v2094 = vadd.f32 %v2093, 1.0
    %v2095 = vrcp.pop %v2094
    %v2096 = vmul.f32 %v2094, %v2095
    %v2097 = vsub.f32 1.0, %v2096
    %v2098 = vmul.f32 %v2095, %v2097
    %v2099 = vadd.f32 %v2095, %v2098
    %vm2100 = vweird.f32 %v2094
    %vm2101 = vweird.f32 %v2095
    %vm2102 = vmor %vm2100, %vm2101
    %v2103 = vsel %vm2102, %v2095, %v2099
    %v2104 = vand.u32 2147483647, %v2094
    %vm2105 = vcmp.eq.f32.partialorder %v2104, 8.507059e+37
    %v2106 = vand.u32 %v2094, 2147483648
    %v2107 = vor.u32 1.1754944e-38, %v2106
    %v2108 = vsel %vm2105, %v2107, %v2103
    %v2109 = vmul.f32 1.0, %v2108
    %v2110 = vxor.u32 %v2088, 2147483648
    %v2111 = vmul.f32 %v2110, 1.442695
    %v2112 = vpow.pop %v2111
    %v2113 = vadd.f32 %v2112, 1.0
    %v2114 = vrcp.pop %v2113
    %v2115 = vmul.f32 %v2113, %v2114
    %v2116 = vsub.f32 1.0, %v2115
    %v2117 = vmul.f32 %v2114, %v2116
    %v2118 = vadd.f32 %v2114, %v2117
    %vm2119 = vweird.f32 %v2113
    %vm2120 = vweird.f32 %v2114
    %vm2121 = vmor %vm2119, %vm2120
    %v2122 = vsel %vm2121, %v2114, %v2118
    %v2123 = vand.u32 2147483647, %v2113
    %vm2124 = vcmp.eq.f32.partialorder %v2123, 8.507059e+37
    %v2125 = vand.u32 %v2113, 2147483648
    %v2126 = vor.u32 1.1754944e-38, %v2125
    %v2127 = vsel %vm2124, %v2126, %v2122
    %v2128 = vmul.f32 1.0, %v2127
    %v2129 = vtanh.pop %v2089
    %v2130 = vxor.u32 %v2090, 2147483648
    %v2131 = vmul.f32 %v2130, 1.442695
    %v2132 = vpow.pop %v2131
    %v2133 = vadd.f32 %v2132, 1.0
    %v2134 = vrcp.pop %v2133
    %v2135 = vmul.f32 %v2133, %v2134
    %v2136 = vsub.f32 1.0, %v2135
    %v2137 = vmul.f32 %v2134, %v2136
    %v2138 = vadd.f32 %v2134, %v2137
    %vm2139 = vweird.f32 %v2133
    %vm2140 = vweird.f32 %v2134
    %vm2141 = vmor %vm2139, %vm2140
    %v2142 = vsel %vm2141, %v2134, %v2138
    %v2143 = vand.u32 2147483647, %v2133
    %vm2144 = vcmp.eq.f32.partialorder %v2143, 8.507059e+37
    %v2145 = vand.u32 %v2133, 2147483648
    %v2146 = vor.u32 1.1754944e-38, %v2145
    %v2147 = vsel %vm2144, %v2146, %v2142
    %v2148 = vmul.f32 1.0, %v2147
    %v2149 = vmul.f32 %v2128, %v1904
    %v2150 = vmul.f32 %v2109, %v2129
    %v2151 = vadd.f32 %v2149, %v2150
    %v2152 = vtanh.pop %v2151
    %v2153 = vmul.f32 %v2148, %v2152
    %v2154 = vmax.f32 %v2153, 0.0
    %v2155 = vld [vmem:[#allocation5] sm:$0xff]
    %v2156 = vld [vmem:[#allocation5 + $0x8] sm:$0xff]
    %v2157 = vld [vmem:[#allocation5 + $0x10] sm:$0xff]
    %v2158 = vld [vmem:[#allocation5 + $0x18] sm:$0xff]
    %v2159 = vld [vmem:[#allocation5 + $0x20] sm:$0xff]
    %v2160 = vld [vmem:[#allocation5 + $0x28] sm:$0xff]
    %v2161 = vld [vmem:[#allocation5 + $0x30] sm:$0xff]
    %v2162 = vld [vmem:[#allocation5 + $0x38] sm:$0xff]
    %v2163 = vld [vmem:[#allocation5 + $0x40] sm:$0xff]
    %v2164 = vld [vmem:[#allocation5 + $0x48] sm:$0xff]
    %v2165 = vld [vmem:[#allocation5 + $0x50] sm:$0xff]
    %v2166 = vld [vmem:[#allocation5 + $0x58] sm:$0xff]
    %v2167 = vld [vmem:[#allocation5 + $0x60] sm:$0xff]
    %v2168 = vld [vmem:[#allocation5 + $0x68] sm:$0xff]
    %v2169 = vld [vmem:[#allocation5 + $0x70] sm:$0xff]
    %v2170 = vld [vmem:[#allocation5 + $0x78] sm:$0xff]
    %v2171 = vld [vmem:[%s5] sm:$0x1]
    %v2173 = vperm.slane %v2171, 0
    %2175 = vmatpush.msra.mxu0 %v2170
    %2176 = vmatpush.msra.mxu0 %v2169
    %2177 = vmatpush.msra.mxu0 %v2168
    %2178 = vmatpush.msra.mxu0 %v2167
    %2179 = vmatpush.msra.mxu0 %v2166
    %2180 = vmatpush.msra.mxu0 %v2165
    %2181 = vmatpush.msra.mxu0 %v2164
    %2182 = vmatpush.msra.mxu0 %v2163
    %2183 = vmatpush.msra.mxu0 %v2162
    %2184 = vmatpush.msra.mxu0 %v2161
    %2185 = vmatpush.msra.mxu0 %v2160
    %2186 = vmatpush.msra.mxu0 %v2159
    %2187 = vmatpush.msra.mxu0 %v2158
    %2188 = vmatpush.msra.mxu0 %v2157
    %2189 = vmatpush.msra.mxu0 %v2156
    %2190 = vmatpush.msra.mxu0 %v2155
    %2191 = vmatmul.f32.gmra.mxu0 %v2154
    %v2192 = vpop.f32.mrf.mxu0
    %v2193 = vadd.f32 %v2173, %v2192
    %2194 = vdwg.mxu0
    %v2195 = vmax.f32 %v2193, 0.0
    %v2196 = vld [vmem:[#allocation7] sm:$0xff]
    %v2197 = vld [vmem:[#allocation7 + $0x8] sm:$0xff]
    %v2198 = vld [vmem:[#allocation7 + $0x10] sm:$0xff]
    %v2199 = vld [vmem:[#allocation7 + $0x18] sm:$0xff]
    %v2200 = vld [vmem:[#allocation7 + $0x20] sm:$0xff]
    %v2201 = vld [vmem:[#allocation7 + $0x28] sm:$0xff]
    %v2202 = vld [vmem:[#allocation7 + $0x30] sm:$0xff]
    %v2203 = vld [vmem:[#allocation7 + $0x38] sm:$0xff]
    %v2204 = vld [vmem:[#allocation7 + $0x40] sm:$0xff]
    %v2205 = vld [vmem:[#allocation7 + $0x48] sm:$0xff]
    %v2206 = vld [vmem:[#allocation7 + $0x50] sm:$0xff]
    %v2207 = vld [vmem:[#allocation7 + $0x58] sm:$0xff]
    %v2208 = vld [vmem:[#allocation7 + $0x60] sm:$0xff]
    %v2209 = vld [vmem:[#allocation7 + $0x68] sm:$0xff]
    %v2210 = vld [vmem:[#allocation7 + $0x70] sm:$0xff]
    %v2211 = vld [vmem:[#allocation7 + $0x78] sm:$0xff]
    %v2212 = vld [vmem:[%s7] sm:$0x1]
    %v2214 = vperm.slane %v2212, 0
    %2216 = vmatpush.msra.mxu0 %v2211
    %2217 = vmatpush.msra.mxu0 %v2210
    %2218 = vmatpush.msra.mxu0 %v2209
    %2219 = vmatpush.msra.mxu0 %v2208
    %2220 = vmatpush.msra.mxu0 %v2207
    %2221 = vmatpush.msra.mxu0 %v2206
    %2222 = vmatpush.msra.mxu0 %v2205
    %2223 = vmatpush.msra.mxu0 %v2204
    %2224 = vmatpush.msra.mxu0 %v2203
    %2225 = vmatpush.msra.mxu0 %v2202
    %2226 = vmatpush.msra.mxu0 %v2201
    %2227 = vmatpush.msra.mxu0 %v2200
    %2228 = vmatpush.msra.mxu0 %v2199
    %2229 = vmatpush.msra.mxu0 %v2198
    %2230 = vmatpush.msra.mxu0 %v2197
    %2231 = vmatpush.msra.mxu0 %v2196
    %2232 = vmatmul.f32.gmra.mxu0 %v2195
    %v2233 = vpop.f32.mrf.mxu0
    %v2234 = vadd.f32 %v2214, %v2233
    %2235 = vdwg.mxu0
    %v2236 = vld [vmem:[#allocation8] sm:$0xff]
    %v2237 = vld [vmem:[#allocation8 + $0x8] sm:$0xff]
    %v2238 = vld [vmem:[#allocation8 + $0x10] sm:$0xff]
    %v2239 = vld [vmem:[#allocation8 + $0x18] sm:$0xff]
    %v2240 = vld [vmem:[#allocation8 + $0x20] sm:$0xff]
    %v2241 = vld [vmem:[#allocation8 + $0x28] sm:$0xff]
    %v2242 = vld [vmem:[#allocation8 + $0x30] sm:$0xff]
    %v2243 = vld [vmem:[#allocation8 + $0x38] sm:$0xff]
    %v2244 = vld [vmem:[#allocation8 + $0x40] sm:$0xff]
    %v2245 = vld [vmem:[#allocation8 + $0x48] sm:$0xff]
    %v2246 = vld [vmem:[#allocation8 + $0x50] sm:$0xff]
    %v2247 = vld [vmem:[#allocation8 + $0x58] sm:$0xff]
    %v2248 = vld [vmem:[#allocation8 + $0x60] sm:$0xff]
    %v2249 = vld [vmem:[#allocation8 + $0x68] sm:$0xff]
    %v2250 = vld [vmem:[#allocation8 + $0x70] sm:$0xff]
    %v2251 = vld [vmem:[#allocation8 + $0x78] sm:$0xff]
    %v2252 = vld [vmem:[%s9] sm:$0x1]
    %v2254 = vperm.slane %v2252, 0
    %2256 = vmatpush.msra.mxu0 %v2251
    %2257 = vmatpush.msra.mxu0 %v2250
    %2258 = vmatpush.msra.mxu0 %v2249
    %2259 = vmatpush.msra.mxu0 %v2248
    %2260 = vmatpush.msra.mxu0 %v2247
    %2261 = vmatpush.msra.mxu0 %v2246
    %2262 = vmatpush.msra.mxu0 %v2245
    %2263 = vmatpush.msra.mxu0 %v2244
    %2264 = vmatpush.msra.mxu0 %v2243
    %2265 = vmatpush.msra.mxu0 %v2242
    %2266 = vmatpush.msra.mxu0 %v2241
    %2267 = vmatpush.msra.mxu0 %v2240
    %2268 = vmatpush.msra.mxu0 %v2239
    %2269 = vmatpush.msra.mxu0 %v2238
    %2270 = vmatpush.msra.mxu0 %v2237
    %2271 = vmatpush.msra.mxu0 %v2236
    %2272 = vmatmul.f32.gmra.mxu0 %v2234
    %v2273 = vpop.f32.mrf.mxu0
    %v2274 = vadd.f32 %v2254, %v2273
    %2275 = vdwg.mxu0
    %2276 = vst [vmem:[#allocation10] sm:$0x3] %v2274
    // Predicated region
    $region58: #{tpu_custom_call.1} parent=1 // pred_check
      _
    $region59: #{tpu_custom_call.1} parent=1 // pred_check_branch
      %2278 = sbr.rel (0) target = $region61
    $region60: #{tpu_custom_call.1} parent=1 // pred_region
      %2280 = vsyncadd [#allocation4], 0
      %s2282 = sshll.u32 [#allocation10], 4
      %s2283 = int_to_ptr.vmem [resolvable:$true] %s2282
      %s2284 = sshll.u32 %s10, 4
      %s2285 = int_to_ptr.hbm [resolvable:$true] %s2284
      %2287 = dma.vmem_to_hbm [thread:$0]  %s2283, 32, %s2285, [#allocation4]
    $region61: #{tpu_custom_call.1} parent=1 // pred_fallthru
      _
    // Predicated region
    $region62: #{tpu_custom_call.1} parent=1 // pred_check
      _
    $region63: #{tpu_custom_call.1} parent=1 // pred_check_branch
      %2289 = sbr.rel (0) target = $region65
    $region64: #{tpu_custom_call.1} parent=1 // pred_region
      %2291 = dma.done [#allocation4], 32
    $region65: #{tpu_custom_call.1} parent=1 // pred_fallthru
      _
    %2292 = vsyncpa [#allocation3], 1
    %2293 = vsyncpa [#allocation6], 1
    %2294 = vsyncpa [#allocation9], 1
    %2295 = vsyncpa [#allocation4], 1

</llo_original>
